<compile_context>
chip_gen: v5e
topology: v5e:2x2
jax: 0.10.0
libtpu: 0.0.40
codegen_flags: <defaults>
</compile_context>

<pallas_src>
import jax
import jax.numpy as jnp
from jax.experimental import pallas as pl
from jax.experimental.pallas import tpu as pltpu


def _choose_s_tile(S, max_tile=256):
    """Largest sequence tile <= max_tile that divides S and is a multiple of 8
    (or S itself, which is always a legal full-dim block)."""
    if S <= max_tile:
        return S
    start = max_tile - (max_tile % 8)
    for t in range(start, 7, -8):
        if S % t == 0:
            return t
    return S


def _make_fused_kernel(kernel_sizes, G, C, Ch, S_TILE, pad_max):
    nk = len(kernel_sizes)

    def kernel(x_ref, *refs):
        # x_ref:   (G, 1, S_pad, D) bf16   -- padded token embeddings, all groups
        # refs:    nk weight refs (K_i, D, C) bf16, then bias (nk, C) f32,
        #          pool (C, Ch) f32, then the output ref (1, S_TILE, G*nk*Ch)
        w_refs = refs[:nk]
        b_ref = refs[nk]
        pool_ref = refs[nk + 1]
        o_ref = refs[nk + 2]

        s_off = pl.multiple_of(pl.program_id(1) * S_TILE, S_TILE)

        # Hoisted loads (once per grid step, reused by all 4*nk pieces).
        pool = pool_ref[...]          # (C, Ch) f32
        bias = b_ref[...]             # (nk, C) f32

        halo = 2 * pad_max
        for g in range(G):
            # Aligned dynamic load of this group's haloed sequence slab; all
            # kernel sizes reuse it (static tap shifts are cheap sublane shifts).
            xg = x_ref[g, 0, pl.ds(s_off, S_TILE + halo), :]      # (S_TILE+halo, D) bf16
            for ki, K in enumerate(kernel_sizes):
                pad_k = (K - 1) // 2
                acc = None
                for t in range(K):                                 # static unroll
                    a = t + (pad_max - pad_k)
                    contrib = jnp.dot(xg[a:a + S_TILE, :], w_refs[ki][t],
                                      preferred_element_type=jnp.float32)
                    acc = contrib if acc is None else acc + contrib
                y = jnp.tanh(acc + bias[ki][None, :])              # f32, EUP
                # AvgPool1d(2,2) over channels as an MXU matmul with the fixed
                # 0.5 pair-pooling matrix (avoids lane-dim strided reshapes).
                pooled = jnp.dot(y, pool, preferred_element_type=jnp.float32)
                c0 = (g * nk + ki) * Ch
                o_ref[0, :, c0:c0 + Ch] = pooled.astype(o_ref.dtype)

    return kernel


def fused_cnn_tanh_pool(x_groups, weights, biases, *, out_dtype=jnp.float32,
                        s_tile_max=256):
    """Fused forward for all 4 groups x all kernel sizes.

    x_groups: (G, B, S, D) float32/any, channels-last, already in group order
    weights:  list of (K_i, D, C) arrays (channels-last conv taps)
    biases:   list of (C,) arrays
    returns:  (B, S, G * len(weights) * (C//2)) in out_dtype
    """
    G, B, S, D = x_groups.shape
    nk = len(weights)
    C = int(weights[0].shape[-1])
    Ch = C // 2
    kernel_sizes = [int(w.shape[0]) for w in weights]
    # TODO(synk): torch's symmetric int((K-1)/2) padding only matches 'same'
    # output length for odd K; even kernel sizes would change the sequence length.
    assert all(k % 2 == 1 for k in kernel_sizes), "only odd kernel sizes supported"

    pad_max = (max(kernel_sizes) - 1) // 2
    S_pad = S + 2 * pad_max
    C_total = G * nk * Ch

    # bf16 matmul operands (f32 accumulation inside the kernel); single pad of the
    # whole 4-group stack instead of one pad per (group, kernel-size) call.
    x_pad = jnp.pad(x_groups.astype(jnp.bfloat16),
                    ((0, 0), (0, 0), (pad_max, pad_max), (0, 0)))
    w_bf = [jnp.asarray(w, jnp.bfloat16) for w in weights]
    b_stack = jnp.stack([jnp.asarray(b, jnp.float32) for b in biases])   # (nk, C)

    # 0.5 pair-pooling matrix, built once here (not per grid step in the kernel).
    row = jax.lax.broadcasted_iota(jnp.int32, (C, Ch), 0)
    col = jax.lax.broadcasted_iota(jnp.int32, (C, Ch), 1)
    pool_mat = jnp.where((row // 2) == col, jnp.float32(0.5), jnp.float32(0.0))

    S_TILE = _choose_s_tile(S, s_tile_max)
    n_s = S // S_TILE

    kernel = _make_fused_kernel(kernel_sizes, G, C, Ch, S_TILE, pad_max)

    in_specs = [pl.BlockSpec((G, 1, S_pad, D), lambda b, s: (0, b, 0, 0))]
    for K in kernel_sizes:
        in_specs.append(pl.BlockSpec((K, D, C), lambda b, s: (0, 0, 0)))
    in_specs.append(pl.BlockSpec((nk, C), lambda b, s: (0, 0)))
    in_specs.append(pl.BlockSpec((C, Ch), lambda b, s: (0, 0)))
    out_spec = pl.BlockSpec((1, S_TILE, C_total), lambda b, s: (b, s, 0))

    # Explicit VMEM budget: double-buffered x/out blocks + resident weights +
    # f32 intermediates. Capped at 64 MiB so it is safe on v7x's smaller VMEM.
    out_isz = jnp.dtype(out_dtype).itemsize
    need = (2 * G * S_pad * D * 2
            + 2 * sum(K * D * C * 2 for K in kernel_sizes)
            + 2 * S_TILE * C_total * out_isz
            + 2 * S_TILE * C * 4
            + C * Ch * 4 + nk * C * 4
            + (1 << 20))
    vmem_limit = int(min(max(2 * need, 16 * 1024 * 1024), 64 * 1024 * 1024))

    return pl.pallas_call(
        kernel,
        out_shape=jax.ShapeDtypeStruct((B, S, C_total), out_dtype),
        grid_spec=pltpu.PrefetchScalarGridSpec(
            num_scalar_prefetch=0,
            grid=(B, n_s),
            in_specs=in_specs,
            out_specs=out_spec,
        ),
        compiler_params=pltpu.CompilerParams(
            dimension_semantics=("parallel", "parallel"),
            vmem_limit_bytes=vmem_limit),
    )(x_pad, *w_bf, b_stack, pool_mat)


class CNNPallas:
    """Pallas equivalent of sentence_transformers ADVANCED_CNN.CNN."""

    def __init__(self, in_word_embedding_dimension, out_channels=256,
                 kernel_sizes=(1, 3, 5), key=None):
        self.in_word_embedding_dimension = in_word_embedding_dimension
        self.out_channels = out_channels
        self.kernel_sizes = list(kernel_sizes)
        self.embeddings_dimension = out_channels * len(self.kernel_sizes)
        if key is None:
            key = jax.random.PRNGKey(42)
        # One Conv1d per kernel size; the torch module SHARES each conv across all
        # 4 layer groups (same module object appended to all 4 ModuleLists).
        # torch weight is (C_out, C_in, K); stored channels-last as (K, C_in, C_out).
        self.params = []
        for k in self.kernel_sizes:
            key, kw, kb = jax.random.split(key, 3)
            fan_in = in_word_embedding_dimension * k
            bound = 1.0 / (fan_in ** 0.5)
            w = jax.random.uniform(kw, (k, in_word_embedding_dimension, out_channels),
                                   jnp.float32, -bound, bound)
            b = jax.random.uniform(kb, (out_channels,), jnp.float32, -bound, bound)
            self.params.append((w, b))

    def forward(self, features):
        token_embeddings = features['all_layer_embeddings']   # list of (B, S, D)
        L = len(token_embeddings)
        # Group g uses layer L - g - 1 (same reversed order as the torch forward).
        x_groups = jnp.stack([token_embeddings[L - idx - 1] for idx in range(4)])
        weights = [w for (w, _) in self.params]
        biases = [b for (_, b) in self.params]
        out = fused_cnn_tanh_pool(x_groups, weights, biases)   # (B, S, 4*nk*C//2)
        new_features = dict(features)
        new_features['token_embeddings'] = out
        return new_features

    def get_word_embedding_dimension(self):
        return self.embeddings_dimension

    # TODO(synk): tokenize()/save()/load() are tokenizer / file I/O with no kernel
    # equivalent; omitted on purpose.


def _ref_forward(x_groups, weights, biases):
    """Pure-JAX reference with the same math (bf16 matmul operands, f32 accum)."""
    G, B, S, D = x_groups.shape
    pieces = []
    for g in range(G):
        for w, b in zip(weights, biases):
            K, _, C = w.shape
            pad = (K - 1) // 2
            xp = jnp.pad(x_groups[g], ((0, 0), (pad, pad), (0, 0))).astype(jnp.bfloat16)
            wb = w.astype(jnp.bfloat16)
            y = jnp.zeros((B, S, C), jnp.float32)
            for t in range(K):
                y = y + jnp.einsum('bsd,dc->bsc', xp[:, t:t + S, :], wb[t],
                                   preferred_element_type=jnp.float32)
            y = jnp.tanh(y + b.astype(jnp.float32))
            pieces.append(y[..., :(C // 2) * 2].reshape(B, S, C // 2, 2).mean(-1))
    return jnp.concatenate(pieces, axis=-1)


if __name__ == "__main__":
    key = jax.random.PRNGKey(0)
    B, S, D = 2, 8, 32
    out_channels = 8
    num_layers = 4                                  # forward uses the last 4 layers

    keys = jax.random.split(key, num_layers)
    all_layer_embeddings = [jax.random.normal(k, (B, S, D), jnp.float32)
                            for k in keys]

    model = CNNPallas(D, out_channels=out_channels, kernel_sizes=[1, 3, 5])
    features = {'all_layer_embeddings': all_layer_embeddings}

    out_features = model.forward(features)
    out = jax.block_until_ready(out_features['token_embeddings'])

    expected_dim = 4 * len(model.kernel_sizes) * (out_channels // 2)
    assert out.shape == (B, S, expected_dim), out.shape

    # Cross-check against a plain-JAX reference of the same torch semantics
    # (bf16 matmul operands in both paths -> tight-ish tolerance is meaningful).
    x_groups = jnp.stack([all_layer_embeddings[num_layers - idx - 1]
                          for idx in range(4)])
    weights = [w for (w, _) in model.params]
    biases = [b for (_, b) in model.params]
    ref = _ref_forward(x_groups, weights, biases)
    max_err = float(jnp.max(jnp.abs(out - ref)))
    assert jnp.allclose(out, ref, atol=1e-3, rtol=1e-3), max_err

    print("KERNEL_OK")
</pallas_src>

<mosaic_0001>
module attributes {stable_mosaic.version = 11 : i64} {
  func.func @kernel(%arg0: i32, %arg1: i32, %arg2: memref<4x1x12x32xbf16, #tpu.memory_space<vmem>>, %arg3: memref<1x32x8xbf16, #tpu.memory_space<vmem>>, %arg4: memref<3x32x8xbf16, #tpu.memory_space<vmem>>, %arg5: memref<5x32x8xbf16, #tpu.memory_space<vmem>>, %arg6: memref<3x8xf32, #tpu.memory_space<vmem>>, %arg7: memref<8x4xf32, #tpu.memory_space<vmem>>, %arg8: memref<1x8x48xf32, #tpu.memory_space<vmem>>) attributes {dimension_semantics = [#tpu.dimension_semantics<parallel>, #tpu.dimension_semantics<parallel>], iteration_bounds = array<i64: 2, 1>, scalar_prefetch = 0 : i64, scratch_operands = 0 : i64, tpu.core_type = #tpu.core_type<tc>, window_params = [{transform_indices = @transform_0, window_bounds = array<i64: 4, 1, 12, 32>}, {pipeline_mode = #tpu.pipeline_mode<synchronous>, transform_indices = @transform_1, window_bounds = array<i64: 1, 32, 8>}, {pipeline_mode = #tpu.pipeline_mode<synchronous>, transform_indices = @transform_2, window_bounds = array<i64: 3, 32, 8>}, {pipeline_mode = #tpu.pipeline_mode<synchronous>, transform_indices = @transform_3, window_bounds = array<i64: 5, 32, 8>}, {pipeline_mode = #tpu.pipeline_mode<synchronous>, transform_indices = @transform_4, window_bounds = array<i64: 3, 8>}, {pipeline_mode = #tpu.pipeline_mode<synchronous>, transform_indices = @transform_5, window_bounds = array<i64: 8, 4>}, {transform_indices = @transform_6, window_bounds = array<i64: 1, 8, 48>}]} {
    %c8_i32 = arith.constant 8 : i32
    %0 = arith.muli %arg1, %c8_i32 : i32
    %1 = tpu.assume_multiple %0, 8 : i32
    %c0 = arith.constant 0 : index
    %c0_0 = arith.constant 0 : index
    %2 = vector.load %arg7[%c0, %c0_0] : memref<8x4xf32, #tpu.memory_space<vmem>>, vector<8x4xf32>
    %c0_1 = arith.constant 0 : index
    %c0_2 = arith.constant 0 : index
    %3 = vector.load %arg6[%c0_1, %c0_2] : memref<3x8xf32, #tpu.memory_space<vmem>>, vector<3x8xf32>
    %c0_3 = arith.constant 0 : index
    %c0_4 = arith.constant 0 : index
    %4 = arith.index_cast %1 : i32 to index
    %c0_5 = arith.constant 0 : index
    %5 = vector.load %arg2[%c0_3, %c0_4, %4, %c0_5] : memref<4x1x12x32xbf16, #tpu.memory_space<vmem>>, vector<1x1x12x32xbf16>
    %6 = vector.shape_cast %5 : vector<1x1x12x32xbf16> to vector<12x32xbf16>
    %7 = vector.extract_strided_slice %6 {offsets = [2, 0], sizes = [8, 32], strides = [1, 1]} : vector<12x32xbf16> to vector<8x32xbf16>
    %c0_6 = arith.constant 0 : index
    %c0_7 = arith.constant 0 : index
    %c0_8 = arith.constant 0 : index
    %8 = vector.load %arg3[%c0_6, %c0_7, %c0_8] : memref<1x32x8xbf16, #tpu.memory_space<vmem>>, vector<1x32x8xbf16>
    %9 = vector.shape_cast %8 : vector<1x32x8xbf16> to vector<32x8xbf16>
    %cst = arith.constant dense<0.000000e+00> : vector<8x8xf32>
    %10 = tpu.matmul %7, %9, %cst {dimension_numbers = #tpu.dot_dimension_numbers<[1], [0], [0], [1], [0, 0, 1, 1], [], []>} : vector<8x32xbf16>, vector<32x8xbf16>, vector<8x8xf32> -> vector<8x8xf32>
    %11 = vector.extract_strided_slice %3 {offsets = [0, 0], sizes = [1, 8], strides = [1, 1]} : vector<3x8xf32> to vector<1x8xf32>
    %12 = vector.shape_cast %11 : vector<1x8xf32> to vector<8xf32>
    %13 = vector.shape_cast %12 : vector<8xf32> to vector<1x8xf32>
    %14 = vector.broadcast %13 : vector<1x8xf32> to vector<8x8xf32>
    %15 = arith.addf %10, %14 : vector<8x8xf32>
    %16 = math.tanh %15 : vector<8x8xf32>
    %cst_9 = arith.constant dense<0.000000e+00> : vector<8x4xf32>
    %17 = tpu.matmul %16, %2, %cst_9 {dimension_numbers = #tpu.dot_dimension_numbers<[1], [0], [0], [1], [0, 0, 1, 1], [], []>} : vector<8x8xf32>, vector<8x4xf32>, vector<8x4xf32> -> vector<8x4xf32>
    %c0_10 = arith.constant 0 : index
    %c0_11 = arith.constant 0 : index
    %c0_12 = arith.constant 0 : index
    %18 = vector.load %arg8[%c0_10, %c0_11, %c0_12] : memref<1x8x48xf32, #tpu.memory_space<vmem>>, vector<1x8x4xf32>
    %19 = vector.shape_cast %18 : vector<1x8x4xf32> to vector<8x4xf32>
    %20 = vector.shape_cast %17 : vector<8x4xf32> to vector<1x8x4xf32>
    tpu.vector_store %arg8[%c0_10, %c0_11, %c0_12], %20 {strides = array<i32>} : memref<1x8x48xf32, #tpu.memory_space<vmem>>, vector<1x8x4xf32>,
    %21 = vector.extract_strided_slice %6 {offsets = [1, 0], sizes = [8, 32], strides = [1, 1]} : vector<12x32xbf16> to vector<8x32xbf16>
    %c0_13 = arith.constant 0 : index
    %c0_14 = arith.constant 0 : index
    %c0_15 = arith.constant 0 : index
    %22 = vector.load %arg4[%c0_13, %c0_14, %c0_15] : memref<3x32x8xbf16, #tpu.memory_space<vmem>>, vector<1x32x8xbf16>
    %23 = vector.shape_cast %22 : vector<1x32x8xbf16> to vector<32x8xbf16>
    %cst_16 = arith.constant dense<0.000000e+00> : vector<8x8xf32>
    %24 = tpu.matmul %21, %23, %cst_16 {dimension_numbers = #tpu.dot_dimension_numbers<[1], [0], [0], [1], [0, 0, 1, 1], [], []>} : vector<8x32xbf16>, vector<32x8xbf16>, vector<8x8xf32> -> vector<8x8xf32>
    %25 = vector.extract_strided_slice %6 {offsets = [2, 0], sizes = [8, 32], strides = [1, 1]} : vector<12x32xbf16> to vector<8x32xbf16>
    %c1 = arith.constant 1 : index
    %c0_17 = arith.constant 0 : index
    %c0_18 = arith.constant 0 : index
    %26 = vector.load %arg4[%c1, %c0_17, %c0_18] : memref<3x32x8xbf16, #tpu.memory_space<vmem>>, vector<1x32x8xbf16>
    %27 = vector.shape_cast %26 : vector<1x32x8xbf16> to vector<32x8xbf16>
    %cst_19 = arith.constant dense<0.000000e+00> : vector<8x8xf32>
    %28 = tpu.matmul %25, %27, %cst_19 {dimension_numbers = #tpu.dot_dimension_numbers<[1], [0], [0], [1], [0, 0, 1, 1], [], []>} : vector<8x32xbf16>, vector<32x8xbf16>, vector<8x8xf32> -> vector<8x8xf32>
    %29 = arith.addf %24, %28 : vector<8x8xf32>
    %30 = vector.extract_strided_slice %6 {offsets = [3, 0], sizes = [8, 32], strides = [1, 1]} : vector<12x32xbf16> to vector<8x32xbf16>
    %c2 = arith.constant 2 : index
    %c0_20 = arith.constant 0 : index
    %c0_21 = arith.constant 0 : index
    %31 = vector.load %arg4[%c2, %c0_20, %c0_21] : memref<3x32x8xbf16, #tpu.memory_space<vmem>>, vector<1x32x8xbf16>
    %32 = vector.shape_cast %31 : vector<1x32x8xbf16> to vector<32x8xbf16>
    %cst_22 = arith.constant dense<0.000000e+00> : vector<8x8xf32>
    %33 = tpu.matmul %30, %32, %cst_22 {dimension_numbers = #tpu.dot_dimension_numbers<[1], [0], [0], [1], [0, 0, 1, 1], [], []>} : vector<8x32xbf16>, vector<32x8xbf16>, vector<8x8xf32> -> vector<8x8xf32>
    %34 = arith.addf %29, %33 : vector<8x8xf32>
    %35 = vector.extract_strided_slice %3 {offsets = [1, 0], sizes = [1, 8], strides = [1, 1]} : vector<3x8xf32> to vector<1x8xf32>
    %36 = vector.shape_cast %35 : vector<1x8xf32> to vector<8xf32>
    %37 = vector.shape_cast %36 : vector<8xf32> to vector<1x8xf32>
    %38 = vector.broadcast %37 : vector<1x8xf32> to vector<8x8xf32>
    %39 = arith.addf %34, %38 : vector<8x8xf32>
    %40 = math.tanh %39 : vector<8x8xf32>
    %cst_23 = arith.constant dense<0.000000e+00> : vector<8x4xf32>
    %41 = tpu.matmul %40, %2, %cst_23 {dimension_numbers = #tpu.dot_dimension_numbers<[1], [0], [0], [1], [0, 0, 1, 1], [], []>} : vector<8x8xf32>, vector<8x4xf32>, vector<8x4xf32> -> vector<8x4xf32>
    %c0_24 = arith.constant 0 : index
    %c0_25 = arith.constant 0 : index
    %c4 = arith.constant 4 : index
    %42 = vector.load %arg8[%c0_24, %c0_25, %c4] : memref<1x8x48xf32, #tpu.memory_space<vmem>>, vector<1x8x4xf32>
    %43 = vector.shape_cast %42 : vector<1x8x4xf32> to vector<8x4xf32>
    %44 = vector.shape_cast %41 : vector<8x4xf32> to vector<1x8x4xf32>
    tpu.vector_store %arg8[%c0_24, %c0_25, %c4], %44 {strides = array<i32>} : memref<1x8x48xf32, #tpu.memory_space<vmem>>, vector<1x8x4xf32>,
    %45 = vector.extract_strided_slice %6 {offsets = [0, 0], sizes = [8, 32], strides = [1, 1]} : vector<12x32xbf16> to vector<8x32xbf16>
    %c0_26 = arith.constant 0 : index
    %c0_27 = arith.constant 0 : index
    %c0_28 = arith.constant 0 : index
    %46 = vector.load %arg5[%c0_26, %c0_27, %c0_28] : memref<5x32x8xbf16, #tpu.memory_space<vmem>>, vector<1x32x8xbf16>
    %47 = vector.shape_cast %46 : vector<1x32x8xbf16> to vector<32x8xbf16>
    %cst_29 = arith.constant dense<0.000000e+00> : vector<8x8xf32>
    %48 = tpu.matmul %45, %47, %cst_29 {dimension_numbers = #tpu.dot_dimension_numbers<[1], [0], [0], [1], [0, 0, 1, 1], [], []>} : vector<8x32xbf16>, vector<32x8xbf16>, vector<8x8xf32> -> vector<8x8xf32>
    %49 = vector.extract_strided_slice %6 {offsets = [1, 0], sizes = [8, 32], strides = [1, 1]} : vector<12x32xbf16> to vector<8x32xbf16>
    %c1_30 = arith.constant 1 : index
    %c0_31 = arith.constant 0 : index
    %c0_32 = arith.constant 0 : index
    %50 = vector.load %arg5[%c1_30, %c0_31, %c0_32] : memref<5x32x8xbf16, #tpu.memory_space<vmem>>, vector<1x32x8xbf16>
    %51 = vector.shape_cast %50 : vector<1x32x8xbf16> to vector<32x8xbf16>
    %cst_33 = arith.constant dense<0.000000e+00> : vector<8x8xf32>
    %52 = tpu.matmul %49, %51, %cst_33 {dimension_numbers = #tpu.dot_dimension_numbers<[1], [0], [0], [1], [0, 0, 1, 1], [], []>} : vector<8x32xbf16>, vector<32x8xbf16>, vector<8x8xf32> -> vector<8x8xf32>
    %53 = arith.addf %48, %52 : vector<8x8xf32>
    %54 = vector.extract_strided_slice %6 {offsets = [2, 0], sizes = [8, 32], strides = [1, 1]} : vector<12x32xbf16> to vector<8x32xbf16>
    %c2_34 = arith.constant 2 : index
    %c0_35 = arith.constant 0 : index
    %c0_36 = arith.constant 0 : index
    %55 = vector.load %arg5[%c2_34, %c0_35, %c0_36] : memref<5x32x8xbf16, #tpu.memory_space<vmem>>, vector<1x32x8xbf16>
    %56 = vector.shape_cast %55 : vector<1x32x8xbf16> to vector<32x8xbf16>
    %cst_37 = arith.constant dense<0.000000e+00> : vector<8x8xf32>
    %57 = tpu.matmul %54, %56, %cst_37 {dimension_numbers = #tpu.dot_dimension_numbers<[1], [0], [0], [1], [0, 0, 1, 1], [], []>} : vector<8x32xbf16>, vector<32x8xbf16>, vector<8x8xf32> -> vector<8x8xf32>
    %58 = arith.addf %53, %57 : vector<8x8xf32>
    %59 = vector.extract_strided_slice %6 {offsets = [3, 0], sizes = [8, 32], strides = [1, 1]} : vector<12x32xbf16> to vector<8x32xbf16>
    %c3 = arith.constant 3 : index
    %c0_38 = arith.constant 0 : index
    %c0_39 = arith.constant 0 : index
    %60 = vector.load %arg5[%c3, %c0_38, %c0_39] : memref<5x32x8xbf16, #tpu.memory_space<vmem>>, vector<1x32x8xbf16>
    %61 = vector.shape_cast %60 : vector<1x32x8xbf16> to vector<32x8xbf16>
    %cst_40 = arith.constant dense<0.000000e+00> : vector<8x8xf32>
    %62 = tpu.matmul %59, %61, %cst_40 {dimension_numbers = #tpu.dot_dimension_numbers<[1], [0], [0], [1], [0, 0, 1, 1], [], []>} : vector<8x32xbf16>, vector<32x8xbf16>, vector<8x8xf32> -> vector<8x8xf32>
    %63 = arith.addf %58, %62 : vector<8x8xf32>
    %64 = vector.extract_strided_slice %6 {offsets = [4, 0], sizes = [8, 32], strides = [1, 1]} : vector<12x32xbf16> to vector<8x32xbf16>
    %c4_41 = arith.constant 4 : index
    %c0_42 = arith.constant 0 : index
    %c0_43 = arith.constant 0 : index
    %65 = vector.load %arg5[%c4_41, %c0_42, %c0_43] : memref<5x32x8xbf16, #tpu.memory_space<vmem>>, vector<1x32x8xbf16>
    %66 = vector.shape_cast %65 : vector<1x32x8xbf16> to vector<32x8xbf16>
    %cst_44 = arith.constant dense<0.000000e+00> : vector<8x8xf32>
    %67 = tpu.matmul %64, %66, %cst_44 {dimension_numbers = #tpu.dot_dimension_numbers<[1], [0], [0], [1], [0, 0, 1, 1], [], []>} : vector<8x32xbf16>, vector<32x8xbf16>, vector<8x8xf32> -> vector<8x8xf32>
    %68 = arith.addf %63, %67 : vector<8x8xf32>
    %69 = vector.extract_strided_slice %3 {offsets = [2, 0], sizes = [1, 8], strides = [1, 1]} : vector<3x8xf32> to vector<1x8xf32>
    %70 = vector.shape_cast %69 : vector<1x8xf32> to vector<8xf32>
    %71 = vector.shape_cast %70 : vector<8xf32> to vector<1x8xf32>
    %72 = vector.broadcast %71 : vector<1x8xf32> to vector<8x8xf32>
    %73 = arith.addf %68, %72 : vector<8x8xf32>
    %74 = math.tanh %73 : vector<8x8xf32>
    %cst_45 = arith.constant dense<0.000000e+00> : vector<8x4xf32>
    %75 = tpu.matmul %74, %2, %cst_45 {dimension_numbers = #tpu.dot_dimension_numbers<[1], [0], [0], [1], [0, 0, 1, 1], [], []>} : vector<8x8xf32>, vector<8x4xf32>, vector<8x4xf32> -> vector<8x4xf32>
    %c0_46 = arith.constant 0 : index
    %c0_47 = arith.constant 0 : index
    %c8 = arith.constant 8 : index
    %76 = vector.load %arg8[%c0_46, %c0_47, %c8] : memref<1x8x48xf32, #tpu.memory_space<vmem>>, vector<1x8x4xf32>
    %77 = vector.shape_cast %76 : vector<1x8x4xf32> to vector<8x4xf32>
    %78 = vector.shape_cast %75 : vector<8x4xf32> to vector<1x8x4xf32>
    tpu.vector_store %arg8[%c0_46, %c0_47, %c8], %78 {strides = array<i32>} : memref<1x8x48xf32, #tpu.memory_space<vmem>>, vector<1x8x4xf32>,
    %c1_48 = arith.constant 1 : index
    %c0_49 = arith.constant 0 : index
    %79 = arith.index_cast %1 : i32 to index
    %c0_50 = arith.constant 0 : index
    %80 = vector.load %arg2[%c1_48, %c0_49, %79, %c0_50] : memref<4x1x12x32xbf16, #tpu.memory_space<vmem>>, vector<1x1x12x32xbf16>
    %81 = vector.shape_cast %80 : vector<1x1x12x32xbf16> to vector<12x32xbf16>
    %82 = vector.extract_strided_slice %81 {offsets = [2, 0], sizes = [8, 32], strides = [1, 1]} : vector<12x32xbf16> to vector<8x32xbf16>
    %c0_51 = arith.constant 0 : index
    %c0_52 = arith.constant 0 : index
    %c0_53 = arith.constant 0 : index
    %83 = vector.load %arg3[%c0_51, %c0_52, %c0_53] : memref<1x32x8xbf16, #tpu.memory_space<vmem>>, vector<1x32x8xbf16>
    %84 = vector.shape_cast %83 : vector<1x32x8xbf16> to vector<32x8xbf16>
    %cst_54 = arith.constant dense<0.000000e+00> : vector<8x8xf32>
    %85 = tpu.matmul %82, %84, %cst_54 {dimension_numbers = #tpu.dot_dimension_numbers<[1], [0], [0], [1], [0, 0, 1, 1], [], []>} : vector<8x32xbf16>, vector<32x8xbf16>, vector<8x8xf32> -> vector<8x8xf32>
    %86 = vector.extract_strided_slice %3 {offsets = [0, 0], sizes = [1, 8], strides = [1, 1]} : vector<3x8xf32> to vector<1x8xf32>
    %87 = vector.shape_cast %86 : vector<1x8xf32> to vector<8xf32>
    %88 = vector.shape_cast %87 : vector<8xf32> to vector<1x8xf32>
    %89 = vector.broadcast %88 : vector<1x8xf32> to vector<8x8xf32>
    %90 = arith.addf %85, %89 : vector<8x8xf32>
    %91 = math.tanh %90 : vector<8x8xf32>
    %cst_55 = arith.constant dense<0.000000e+00> : vector<8x4xf32>
    %92 = tpu.matmul %91, %2, %cst_55 {dimension_numbers = #tpu.dot_dimension_numbers<[1], [0], [0], [1], [0, 0, 1, 1], [], []>} : vector<8x8xf32>, vector<8x4xf32>, vector<8x4xf32> -> vector<8x4xf32>
    %c0_56 = arith.constant 0 : index
    %c0_57 = arith.constant 0 : index
    %c12 = arith.constant 12 : index
    %93 = vector.load %arg8[%c0_56, %c0_57, %c12] : memref<1x8x48xf32, #tpu.memory_space<vmem>>, vector<1x8x4xf32>
    %94 = vector.shape_cast %93 : vector<1x8x4xf32> to vector<8x4xf32>
    %95 = vector.shape_cast %92 : vector<8x4xf32> to vector<1x8x4xf32>
    tpu.vector_store %arg8[%c0_56, %c0_57, %c12], %95 {strides = array<i32>} : memref<1x8x48xf32, #tpu.memory_space<vmem>>, vector<1x8x4xf32>,
    %96 = vector.extract_strided_slice %81 {offsets = [1, 0], sizes = [8, 32], strides = [1, 1]} : vector<12x32xbf16> to vector<8x32xbf16>
    %c0_58 = arith.constant 0 : index
    %c0_59 = arith.constant 0 : index
    %c0_60 = arith.constant 0 : index
    %97 = vector.load %arg4[%c0_58, %c0_59, %c0_60] : memref<3x32x8xbf16, #tpu.memory_space<vmem>>, vector<1x32x8xbf16>
    %98 = vector.shape_cast %97 : vector<1x32x8xbf16> to vector<32x8xbf16>
    %cst_61 = arith.constant dense<0.000000e+00> : vector<8x8xf32>
    %99 = tpu.matmul %96, %98, %cst_61 {dimension_numbers = #tpu.dot_dimension_numbers<[1], [0], [0], [1], [0, 0, 1, 1], [], []>} : vector<8x32xbf16>, vector<32x8xbf16>, vector<8x8xf32> -> vector<8x8xf32>
    %100 = vector.extract_strided_slice %81 {offsets = [2, 0], sizes = [8, 32], strides = [1, 1]} : vector<12x32xbf16> to vector<8x32xbf16>
    %c1_62 = arith.constant 1 : index
    %c0_63 = arith.constant 0 : index
    %c0_64 = arith.constant 0 : index
    %101 = vector.load %arg4[%c1_62, %c0_63, %c0_64] : memref<3x32x8xbf16, #tpu.memory_space<vmem>>, vector<1x32x8xbf16>
    %102 = vector.shape_cast %101 : vector<1x32x8xbf16> to vector<32x8xbf16>
    %cst_65 = arith.constant dense<0.000000e+00> : vector<8x8xf32>
    %103 = tpu.matmul %100, %102, %cst_65 {dimension_numbers = #tpu.dot_dimension_numbers<[1], [0], [0], [1], [0, 0, 1, 1], [], []>} : vector<8x32xbf16>, vector<32x8xbf16>, vector<8x8xf32> -> vector<8x8xf32>
    %104 = arith.addf %99, %103 : vector<8x8xf32>
    %105 = vector.extract_strided_slice %81 {offsets = [3, 0], sizes = [8, 32], strides = [1, 1]} : vector<12x32xbf16> to vector<8x32xbf16>
    %c2_66 = arith.constant 2 : index
    %c0_67 = arith.constant 0 : index
    %c0_68 = arith.constant 0 : index
    %106 = vector.load %arg4[%c2_66, %c0_67, %c0_68] : memref<3x32x8xbf16, #tpu.memory_space<vmem>>, vector<1x32x8xbf16>
    %107 = vector.shape_cast %106 : vector<1x32x8xbf16> to vector<32x8xbf16>
    %cst_69 = arith.constant dense<0.000000e+00> : vector<8x8xf32>
    %108 = tpu.matmul %105, %107, %cst_69 {dimension_numbers = #tpu.dot_dimension_numbers<[1], [0], [0], [1], [0, 0, 1, 1], [], []>} : vector<8x32xbf16>, vector<32x8xbf16>, vector<8x8xf32> -> vector<8x8xf32>
    %109 = arith.addf %104, %108 : vector<8x8xf32>
    %110 = vector.extract_strided_slice %3 {offsets = [1, 0], sizes = [1, 8], strides = [1, 1]} : vector<3x8xf32> to vector<1x8xf32>
    %111 = vector.shape_cast %110 : vector<1x8xf32> to vector<8xf32>
    %112 = vector.shape_cast %111 : vector<8xf32> to vector<1x8xf32>
    %113 = vector.broadcast %112 : vector<1x8xf32> to vector<8x8xf32>
    %114 = arith.addf %109, %113 : vector<8x8xf32>
    %115 = math.tanh %114 : vector<8x8xf32>
    %cst_70 = arith.constant dense<0.000000e+00> : vector<8x4xf32>
    %116 = tpu.matmul %115, %2, %cst_70 {dimension_numbers = #tpu.dot_dimension_numbers<[1], [0], [0], [1], [0, 0, 1, 1], [], []>} : vector<8x8xf32>, vector<8x4xf32>, vector<8x4xf32> -> vector<8x4xf32>
    %c0_71 = arith.constant 0 : index
    %c0_72 = arith.constant 0 : index
    %c16 = arith.constant 16 : index
    %117 = vector.load %arg8[%c0_71, %c0_72, %c16] : memref<1x8x48xf32, #tpu.memory_space<vmem>>, vector<1x8x4xf32>
    %118 = vector.shape_cast %117 : vector<1x8x4xf32> to vector<8x4xf32>
    %119 = vector.shape_cast %116 : vector<8x4xf32> to vector<1x8x4xf32>
    tpu.vector_store %arg8[%c0_71, %c0_72, %c16], %119 {strides = array<i32>} : memref<1x8x48xf32, #tpu.memory_space<vmem>>, vector<1x8x4xf32>,
    %120 = vector.extract_strided_slice %81 {offsets = [0, 0], sizes = [8, 32], strides = [1, 1]} : vector<12x32xbf16> to vector<8x32xbf16>
    %c0_73 = arith.constant 0 : index
    %c0_74 = arith.constant 0 : index
    %c0_75 = arith.constant 0 : index
    %121 = vector.load %arg5[%c0_73, %c0_74, %c0_75] : memref<5x32x8xbf16, #tpu.memory_space<vmem>>, vector<1x32x8xbf16>
    %122 = vector.shape_cast %121 : vector<1x32x8xbf16> to vector<32x8xbf16>
    %cst_76 = arith.constant dense<0.000000e+00> : vector<8x8xf32>
    %123 = tpu.matmul %120, %122, %cst_76 {dimension_numbers = #tpu.dot_dimension_numbers<[1], [0], [0], [1], [0, 0, 1, 1], [], []>} : vector<8x32xbf16>, vector<32x8xbf16>, vector<8x8xf32> -> vector<8x8xf32>
    %124 = vector.extract_strided_slice %81 {offsets = [1, 0], sizes = [8, 32], strides = [1, 1]} : vector<12x32xbf16> to vector<8x32xbf16>
    %c1_77 = arith.constant 1 : index
    %c0_78 = arith.constant 0 : index
    %c0_79 = arith.constant 0 : index
    %125 = vector.load %arg5[%c1_77, %c0_78, %c0_79] : memref<5x32x8xbf16, #tpu.memory_space<vmem>>, vector<1x32x8xbf16>
    %126 = vector.shape_cast %125 : vector<1x32x8xbf16> to vector<32x8xbf16>
    %cst_80 = arith.constant dense<0.000000e+00> : vector<8x8xf32>
    %127 = tpu.matmul %124, %126, %cst_80 {dimension_numbers = #tpu.dot_dimension_numbers<[1], [0], [0], [1], [0, 0, 1, 1], [], []>} : vector<8x32xbf16>, vector<32x8xbf16>, vector<8x8xf32> -> vector<8x8xf32>
    %128 = arith.addf %123, %127 : vector<8x8xf32>
    %129 = vector.extract_strided_slice %81 {offsets = [2, 0], sizes = [8, 32], strides = [1, 1]} : vector<12x32xbf16> to vector<8x32xbf16>
    %c2_81 = arith.constant 2 : index
    %c0_82 = arith.constant 0 : index
    %c0_83 = arith.constant 0 : index
    %130 = vector.load %arg5[%c2_81, %c0_82, %c0_83] : memref<5x32x8xbf16, #tpu.memory_space<vmem>>, vector<1x32x8xbf16>
    %131 = vector.shape_cast %130 : vector<1x32x8xbf16> to vector<32x8xbf16>
    %cst_84 = arith.constant dense<0.000000e+00> : vector<8x8xf32>
    %132 = tpu.matmul %129, %131, %cst_84 {dimension_numbers = #tpu.dot_dimension_numbers<[1], [0], [0], [1], [0, 0, 1, 1], [], []>} : vector<8x32xbf16>, vector<32x8xbf16>, vector<8x8xf32> -> vector<8x8xf32>
    %133 = arith.addf %128, %132 : vector<8x8xf32>
    %134 = vector.extract_strided_slice %81 {offsets = [3, 0], sizes = [8, 32], strides = [1, 1]} : vector<12x32xbf16> to vector<8x32xbf16>
    %c3_85 = arith.constant 3 : index
    %c0_86 = arith.constant 0 : index
    %c0_87 = arith.constant 0 : index
    %135 = vector.load %arg5[%c3_85, %c0_86, %c0_87] : memref<5x32x8xbf16, #tpu.memory_space<vmem>>, vector<1x32x8xbf16>
    %136 = vector.shape_cast %135 : vector<1x32x8xbf16> to vector<32x8xbf16>
    %cst_88 = arith.constant dense<0.000000e+00> : vector<8x8xf32>
    %137 = tpu.matmul %134, %136, %cst_88 {dimension_numbers = #tpu.dot_dimension_numbers<[1], [0], [0], [1], [0, 0, 1, 1], [], []>} : vector<8x32xbf16>, vector<32x8xbf16>, vector<8x8xf32> -> vector<8x8xf32>
    %138 = arith.addf %133, %137 : vector<8x8xf32>
    %139 = vector.extract_strided_slice %81 {offsets = [4, 0], sizes = [8, 32], strides = [1, 1]} : vector<12x32xbf16> to vector<8x32xbf16>
    %c4_89 = arith.constant 4 : index
    %c0_90 = arith.constant 0 : index
    %c0_91 = arith.constant 0 : index
    %140 = vector.load %arg5[%c4_89, %c0_90, %c0_91] : memref<5x32x8xbf16, #tpu.memory_space<vmem>>, vector<1x32x8xbf16>
    %141 = vector.shape_cast %140 : vector<1x32x8xbf16> to vector<32x8xbf16>
    %cst_92 = arith.constant dense<0.000000e+00> : vector<8x8xf32>
    %142 = tpu.matmul %139, %141, %cst_92 {dimension_numbers = #tpu.dot_dimension_numbers<[1], [0], [0], [1], [0, 0, 1, 1], [], []>} : vector<8x32xbf16>, vector<32x8xbf16>, vector<8x8xf32> -> vector<8x8xf32>
    %143 = arith.addf %138, %142 : vector<8x8xf32>
    %144 = vector.extract_strided_slice %3 {offsets = [2, 0], sizes = [1, 8], strides = [1, 1]} : vector<3x8xf32> to vector<1x8xf32>
    %145 = vector.shape_cast %144 : vector<1x8xf32> to vector<8xf32>
    %146 = vector.shape_cast %145 : vector<8xf32> to vector<1x8xf32>
    %147 = vector.broadcast %146 : vector<1x8xf32> to vector<8x8xf32>
    %148 = arith.addf %143, %147 : vector<8x8xf32>
    %149 = math.tanh %148 : vector<8x8xf32>
    %cst_93 = arith.constant dense<0.000000e+00> : vector<8x4xf32>
    %150 = tpu.matmul %149, %2, %cst_93 {dimension_numbers = #tpu.dot_dimension_numbers<[1], [0], [0], [1], [0, 0, 1, 1], [], []>} : vector<8x8xf32>, vector<8x4xf32>, vector<8x4xf32> -> vector<8x4xf32>
    %c0_94 = arith.constant 0 : index
    %c0_95 = arith.constant 0 : index
    %c20 = arith.constant 20 : index
    %151 = vector.load %arg8[%c0_94, %c0_95, %c20] : memref<1x8x48xf32, #tpu.memory_space<vmem>>, vector<1x8x4xf32>
    %152 = vector.shape_cast %151 : vector<1x8x4xf32> to vector<8x4xf32>
    %153 = vector.shape_cast %150 : vector<8x4xf32> to vector<1x8x4xf32>
    tpu.vector_store %arg8[%c0_94, %c0_95, %c20], %153 {strides = array<i32>} : memref<1x8x48xf32, #tpu.memory_space<vmem>>, vector<1x8x4xf32>,
    %c2_96 = arith.constant 2 : index
    %c0_97 = arith.constant 0 : index
    %154 = arith.index_cast %1 : i32 to index
    %c0_98 = arith.constant 0 : index
    %155 = vector.load %arg2[%c2_96, %c0_97, %154, %c0_98] : memref<4x1x12x32xbf16, #tpu.memory_space<vmem>>, vector<1x1x12x32xbf16>
    %156 = vector.shape_cast %155 : vector<1x1x12x32xbf16> to vector<12x32xbf16>
    %157 = vector.extract_strided_slice %156 {offsets = [2, 0], sizes = [8, 32], strides = [1, 1]} : vector<12x32xbf16> to vector<8x32xbf16>
    %c0_99 = arith.constant 0 : index
    %c0_100 = arith.constant 0 : index
    %c0_101 = arith.constant 0 : index
    %158 = vector.load %arg3[%c0_99, %c0_100, %c0_101] : memref<1x32x8xbf16, #tpu.memory_space<vmem>>, vector<1x32x8xbf16>
    %159 = vector.shape_cast %158 : vector<1x32x8xbf16> to vector<32x8xbf16>
    %cst_102 = arith.constant dense<0.000000e+00> : vector<8x8xf32>
    %160 = tpu.matmul %157, %159, %cst_102 {dimension_numbers = #tpu.dot_dimension_numbers<[1], [0], [0], [1], [0, 0, 1, 1], [], []>} : vector<8x32xbf16>, vector<32x8xbf16>, vector<8x8xf32> -> vector<8x8xf32>
    %161 = vector.extract_strided_slice %3 {offsets = [0, 0], sizes = [1, 8], strides = [1, 1]} : vector<3x8xf32> to vector<1x8xf32>
    %162 = vector.shape_cast %161 : vector<1x8xf32> to vector<8xf32>
    %163 = vector.shape_cast %162 : vector<8xf32> to vector<1x8xf32>
    %164 = vector.broadcast %163 : vector<1x8xf32> to vector<8x8xf32>
    %165 = arith.addf %160, %164 : vector<8x8xf32>
    %166 = math.tanh %165 : vector<8x8xf32>
    %cst_103 = arith.constant dense<0.000000e+00> : vector<8x4xf32>
    %167 = tpu.matmul %166, %2, %cst_103 {dimension_numbers = #tpu.dot_dimension_numbers<[1], [0], [0], [1], [0, 0, 1, 1], [], []>} : vector<8x8xf32>, vector<8x4xf32>, vector<8x4xf32> -> vector<8x4xf32>
    %c0_104 = arith.constant 0 : index
    %c0_105 = arith.constant 0 : index
    %c24 = arith.constant 24 : index
    %168 = vector.load %arg8[%c0_104, %c0_105, %c24] : memref<1x8x48xf32, #tpu.memory_space<vmem>>, vector<1x8x4xf32>
    %169 = vector.shape_cast %168 : vector<1x8x4xf32> to vector<8x4xf32>
    %170 = vector.shape_cast %167 : vector<8x4xf32> to vector<1x8x4xf32>
    tpu.vector_store %arg8[%c0_104, %c0_105, %c24], %170 {strides = array<i32>} : memref<1x8x48xf32, #tpu.memory_space<vmem>>, vector<1x8x4xf32>,
    %171 = vector.extract_strided_slice %156 {offsets = [1, 0], sizes = [8, 32], strides = [1, 1]} : vector<12x32xbf16> to vector<8x32xbf16>
    %c0_106 = arith.constant 0 : index
    %c0_107 = arith.constant 0 : index
    %c0_108 = arith.constant 0 : index
    %172 = vector.load %arg4[%c0_106, %c0_107, %c0_108] : memref<3x32x8xbf16, #tpu.memory_space<vmem>>, vector<1x32x8xbf16>
    %173 = vector.shape_cast %172 : vector<1x32x8xbf16> to vector<32x8xbf16>
    %cst_109 = arith.constant dense<0.000000e+00> : vector<8x8xf32>
    %174 = tpu.matmul %171, %173, %cst_109 {dimension_numbers = #tpu.dot_dimension_numbers<[1], [0], [0], [1], [0, 0, 1, 1], [], []>} : vector<8x32xbf16>, vector<32x8xbf16>, vector<8x8xf32> -> vector<8x8xf32>
    %175 = vector.extract_strided_slice %156 {offsets = [2, 0], sizes = [8, 32], strides = [1, 1]} : vector<12x32xbf16> to vector<8x32xbf16>
    %c1_110 = arith.constant 1 : index
    %c0_111 = arith.constant 0 : index
    %c0_112 = arith.constant 0 : index
    %176 = vector.load %arg4[%c1_110, %c0_111, %c0_112] : memref<3x32x8xbf16, #tpu.memory_space<vmem>>, vector<1x32x8xbf16>
    %177 = vector.shape_cast %176 : vector<1x32x8xbf16> to vector<32x8xbf16>
    %cst_113 = arith.constant dense<0.000000e+00> : vector<8x8xf32>
    %178 = tpu.matmul %175, %177, %cst_113 {dimension_numbers = #tpu.dot_dimension_numbers<[1], [0], [0], [1], [0, 0, 1, 1], [], []>} : vector<8x32xbf16>, vector<32x8xbf16>, vector<8x8xf32> -> vector<8x8xf32>
    %179 = arith.addf %174, %178 : vector<8x8xf32>
    %180 = vector.extract_strided_slice %156 {offsets = [3, 0], sizes = [8, 32], strides = [1, 1]} : vector<12x32xbf16> to vector<8x32xbf16>
    %c2_114 = arith.constant 2 : index
    %c0_115 = arith.constant 0 : index
    %c0_116 = arith.constant 0 : index
    %181 = vector.load %arg4[%c2_114, %c0_115, %c0_116] : memref<3x32x8xbf16, #tpu.memory_space<vmem>>, vector<1x32x8xbf16>
    %182 = vector.shape_cast %181 : vector<1x32x8xbf16> to vector<32x8xbf16>
    %cst_117 = arith.constant dense<0.000000e+00> : vector<8x8xf32>
    %183 = tpu.matmul %180, %182, %cst_117 {dimension_numbers = #tpu.dot_dimension_numbers<[1], [0], [0], [1], [0, 0, 1, 1], [], []>} : vector<8x32xbf16>, vector<32x8xbf16>, vector<8x8xf32> -> vector<8x8xf32>
    %184 = arith.addf %179, %183 : vector<8x8xf32>
    %185 = vector.extract_strided_slice %3 {offsets = [1, 0], sizes = [1, 8], strides = [1, 1]} : vector<3x8xf32> to vector<1x8xf32>
    %186 = vector.shape_cast %185 : vector<1x8xf32> to vector<8xf32>
    %187 = vector.shape_cast %186 : vector<8xf32> to vector<1x8xf32>
    %188 = vector.broadcast %187 : vector<1x8xf32> to vector<8x8xf32>
    %189 = arith.addf %184, %188 : vector<8x8xf32>
    %190 = math.tanh %189 : vector<8x8xf32>
    %cst_118 = arith.constant dense<0.000000e+00> : vector<8x4xf32>
    %191 = tpu.matmul %190, %2, %cst_118 {dimension_numbers = #tpu.dot_dimension_numbers<[1], [0], [0], [1], [0, 0, 1, 1], [], []>} : vector<8x8xf32>, vector<8x4xf32>, vector<8x4xf32> -> vector<8x4xf32>
    %c0_119 = arith.constant 0 : index
    %c0_120 = arith.constant 0 : index
    %c28 = arith.constant 28 : index
    %192 = vector.load %arg8[%c0_119, %c0_120, %c28] : memref<1x8x48xf32, #tpu.memory_space<vmem>>, vector<1x8x4xf32>
    %193 = vector.shape_cast %192 : vector<1x8x4xf32> to vector<8x4xf32>
    %194 = vector.shape_cast %191 : vector<8x4xf32> to vector<1x8x4xf32>
    tpu.vector_store %arg8[%c0_119, %c0_120, %c28], %194 {strides = array<i32>} : memref<1x8x48xf32, #tpu.memory_space<vmem>>, vector<1x8x4xf32>,
    %195 = vector.extract_strided_slice %156 {offsets = [0, 0], sizes = [8, 32], strides = [1, 1]} : vector<12x32xbf16> to vector<8x32xbf16>
    %c0_121 = arith.constant 0 : index
    %c0_122 = arith.constant 0 : index
    %c0_123 = arith.constant 0 : index
    %196 = vector.load %arg5[%c0_121, %c0_122, %c0_123] : memref<5x32x8xbf16, #tpu.memory_space<vmem>>, vector<1x32x8xbf16>
    %197 = vector.shape_cast %196 : vector<1x32x8xbf16> to vector<32x8xbf16>
    %cst_124 = arith.constant dense<0.000000e+00> : vector<8x8xf32>
    %198 = tpu.matmul %195, %197, %cst_124 {dimension_numbers = #tpu.dot_dimension_numbers<[1], [0], [0], [1], [0, 0, 1, 1], [], []>} : vector<8x32xbf16>, vector<32x8xbf16>, vector<8x8xf32> -> vector<8x8xf32>
    %199 = vector.extract_strided_slice %156 {offsets = [1, 0], sizes = [8, 32], strides = [1, 1]} : vector<12x32xbf16> to vector<8x32xbf16>
    %c1_125 = arith.constant 1 : index
    %c0_126 = arith.constant 0 : index
    %c0_127 = arith.constant 0 : index
    %200 = vector.load %arg5[%c1_125, %c0_126, %c0_127] : memref<5x32x8xbf16, #tpu.memory_space<vmem>>, vector<1x32x8xbf16>
    %201 = vector.shape_cast %200 : vector<1x32x8xbf16> to vector<32x8xbf16>
    %cst_128 = arith.constant dense<0.000000e+00> : vector<8x8xf32>
    %202 = tpu.matmul %199, %201, %cst_128 {dimension_numbers = #tpu.dot_dimension_numbers<[1], [0], [0], [1], [0, 0, 1, 1], [], []>} : vector<8x32xbf16>, vector<32x8xbf16>, vector<8x8xf32> -> vector<8x8xf32>
    %203 = arith.addf %198, %202 : vector<8x8xf32>
    %204 = vector.extract_strided_slice %156 {offsets = [2, 0], sizes = [8, 32], strides = [1, 1]} : vector<12x32xbf16> to vector<8x32xbf16>
    %c2_129 = arith.constant 2 : index
    %c0_130 = arith.constant 0 : index
    %c0_131 = arith.constant 0 : index
    %205 = vector.load %arg5[%c2_129, %c0_130, %c0_131] : memref<5x32x8xbf16, #tpu.memory_space<vmem>>, vector<1x32x8xbf16>
    %206 = vector.shape_cast %205 : vector<1x32x8xbf16> to vector<32x8xbf16>
    %cst_132 = arith.constant dense<0.000000e+00> : vector<8x8xf32>
    %207 = tpu.matmul %204, %206, %cst_132 {dimension_numbers = #tpu.dot_dimension_numbers<[1], [0], [0], [1], [0, 0, 1, 1], [], []>} : vector<8x32xbf16>, vector<32x8xbf16>, vector<8x8xf32> -> vector<8x8xf32>
    %208 = arith.addf %203, %207 : vector<8x8xf32>
    %209 = vector.extract_strided_slice %156 {offsets = [3, 0], sizes = [8, 32], strides = [1, 1]} : vector<12x32xbf16> to vector<8x32xbf16>
    %c3_133 = arith.constant 3 : index
    %c0_134 = arith.constant 0 : index
    %c0_135 = arith.constant 0 : index
    %210 = vector.load %arg5[%c3_133, %c0_134, %c0_135] : memref<5x32x8xbf16, #tpu.memory_space<vmem>>, vector<1x32x8xbf16>
    %211 = vector.shape_cast %210 : vector<1x32x8xbf16> to vector<32x8xbf16>
    %cst_136 = arith.constant dense<0.000000e+00> : vector<8x8xf32>
    %212 = tpu.matmul %209, %211, %cst_136 {dimension_numbers = #tpu.dot_dimension_numbers<[1], [0], [0], [1], [0, 0, 1, 1], [], []>} : vector<8x32xbf16>, vector<32x8xbf16>, vector<8x8xf32> -> vector<8x8xf32>
    %213 = arith.addf %208, %212 : vector<8x8xf32>
    %214 = vector.extract_strided_slice %156 {offsets = [4, 0], sizes = [8, 32], strides = [1, 1]} : vector<12x32xbf16> to vector<8x32xbf16>
    %c4_137 = arith.constant 4 : index
    %c0_138 = arith.constant 0 : index
    %c0_139 = arith.constant 0 : index
    %215 = vector.load %arg5[%c4_137, %c0_138, %c0_139] : memref<5x32x8xbf16, #tpu.memory_space<vmem>>, vector<1x32x8xbf16>
    %216 = vector.shape_cast %215 : vector<1x32x8xbf16> to vector<32x8xbf16>
    %cst_140 = arith.constant dense<0.000000e+00> : vector<8x8xf32>
    %217 = tpu.matmul %214, %216, %cst_140 {dimension_numbers = #tpu.dot_dimension_numbers<[1], [0], [0], [1], [0, 0, 1, 1], [], []>} : vector<8x32xbf16>, vector<32x8xbf16>, vector<8x8xf32> -> vector<8x8xf32>
    %218 = arith.addf %213, %217 : vector<8x8xf32>
    %219 = vector.extract_strided_slice %3 {offsets = [2, 0], sizes = [1, 8], strides = [1, 1]} : vector<3x8xf32> to vector<1x8xf32>
    %220 = vector.shape_cast %219 : vector<1x8xf32> to vector<8xf32>
    %221 = vector.shape_cast %220 : vector<8xf32> to vector<1x8xf32>
    %222 = vector.broadcast %221 : vector<1x8xf32> to vector<8x8xf32>
    %223 = arith.addf %218, %222 : vector<8x8xf32>
    %224 = math.tanh %223 : vector<8x8xf32>
    %cst_141 = arith.constant dense<0.000000e+00> : vector<8x4xf32>
    %225 = tpu.matmul %224, %2, %cst_141 {dimension_numbers = #tpu.dot_dimension_numbers<[1], [0], [0], [1], [0, 0, 1, 1], [], []>} : vector<8x8xf32>, vector<8x4xf32>, vector<8x4xf32> -> vector<8x4xf32>
    %c0_142 = arith.constant 0 : index
    %c0_143 = arith.constant 0 : index
    %c32 = arith.constant 32 : index
    %226 = vector.load %arg8[%c0_142, %c0_143, %c32] : memref<1x8x48xf32, #tpu.memory_space<vmem>>, vector<1x8x4xf32>
    %227 = vector.shape_cast %226 : vector<1x8x4xf32> to vector<8x4xf32>
    %228 = vector.shape_cast %225 : vector<8x4xf32> to vector<1x8x4xf32>
    tpu.vector_store %arg8[%c0_142, %c0_143, %c32], %228 {strides = array<i32>} : memref<1x8x48xf32, #tpu.memory_space<vmem>>, vector<1x8x4xf32>,
    %c3_144 = arith.constant 3 : index
    %c0_145 = arith.constant 0 : index
    %229 = arith.index_cast %1 : i32 to index
    %c0_146 = arith.constant 0 : index
    %230 = vector.load %arg2[%c3_144, %c0_145, %229, %c0_146] : memref<4x1x12x32xbf16, #tpu.memory_space<vmem>>, vector<1x1x12x32xbf16>
    %231 = vector.shape_cast %230 : vector<1x1x12x32xbf16> to vector<12x32xbf16>
    %232 = vector.extract_strided_slice %231 {offsets = [2, 0], sizes = [8, 32], strides = [1, 1]} : vector<12x32xbf16> to vector<8x32xbf16>
    %c0_147 = arith.constant 0 : index
    %c0_148 = arith.constant 0 : index
    %c0_149 = arith.constant 0 : index
    %233 = vector.load %arg3[%c0_147, %c0_148, %c0_149] : memref<1x32x8xbf16, #tpu.memory_space<vmem>>, vector<1x32x8xbf16>
    %234 = vector.shape_cast %233 : vector<1x32x8xbf16> to vector<32x8xbf16>
    %cst_150 = arith.constant dense<0.000000e+00> : vector<8x8xf32>
    %235 = tpu.matmul %232, %234, %cst_150 {dimension_numbers = #tpu.dot_dimension_numbers<[1], [0], [0], [1], [0, 0, 1, 1], [], []>} : vector<8x32xbf16>, vector<32x8xbf16>, vector<8x8xf32> -> vector<8x8xf32>
    %236 = vector.extract_strided_slice %3 {offsets = [0, 0], sizes = [1, 8], strides = [1, 1]} : vector<3x8xf32> to vector<1x8xf32>
    %237 = vector.shape_cast %236 : vector<1x8xf32> to vector<8xf32>
    %238 = vector.shape_cast %237 : vector<8xf32> to vector<1x8xf32>
    %239 = vector.broadcast %238 : vector<1x8xf32> to vector<8x8xf32>
    %240 = arith.addf %235, %239 : vector<8x8xf32>
    %241 = math.tanh %240 : vector<8x8xf32>
    %cst_151 = arith.constant dense<0.000000e+00> : vector<8x4xf32>
    %242 = tpu.matmul %241, %2, %cst_151 {dimension_numbers = #tpu.dot_dimension_numbers<[1], [0], [0], [1], [0, 0, 1, 1], [], []>} : vector<8x8xf32>, vector<8x4xf32>, vector<8x4xf32> -> vector<8x4xf32>
    %c0_152 = arith.constant 0 : index
    %c0_153 = arith.constant 0 : index
    %c36 = arith.constant 36 : index
    %243 = vector.load %arg8[%c0_152, %c0_153, %c36] : memref<1x8x48xf32, #tpu.memory_space<vmem>>, vector<1x8x4xf32>
    %244 = vector.shape_cast %243 : vector<1x8x4xf32> to vector<8x4xf32>
    %245 = vector.shape_cast %242 : vector<8x4xf32> to vector<1x8x4xf32>
    tpu.vector_store %arg8[%c0_152, %c0_153, %c36], %245 {strides = array<i32>} : memref<1x8x48xf32, #tpu.memory_space<vmem>>, vector<1x8x4xf32>,
    %246 = vector.extract_strided_slice %231 {offsets = [1, 0], sizes = [8, 32], strides = [1, 1]} : vector<12x32xbf16> to vector<8x32xbf16>
    %c0_154 = arith.constant 0 : index
    %c0_155 = arith.constant 0 : index
    %c0_156 = arith.constant 0 : index
    %247 = vector.load %arg4[%c0_154, %c0_155, %c0_156] : memref<3x32x8xbf16, #tpu.memory_space<vmem>>, vector<1x32x8xbf16>
    %248 = vector.shape_cast %247 : vector<1x32x8xbf16> to vector<32x8xbf16>
    %cst_157 = arith.constant dense<0.000000e+00> : vector<8x8xf32>
    %249 = tpu.matmul %246, %248, %cst_157 {dimension_numbers = #tpu.dot_dimension_numbers<[1], [0], [0], [1], [0, 0, 1, 1], [], []>} : vector<8x32xbf16>, vector<32x8xbf16>, vector<8x8xf32> -> vector<8x8xf32>
    %250 = vector.extract_strided_slice %231 {offsets = [2, 0], sizes = [8, 32], strides = [1, 1]} : vector<12x32xbf16> to vector<8x32xbf16>
    %c1_158 = arith.constant 1 : index
    %c0_159 = arith.constant 0 : index
    %c0_160 = arith.constant 0 : index
    %251 = vector.load %arg4[%c1_158, %c0_159, %c0_160] : memref<3x32x8xbf16, #tpu.memory_space<vmem>>, vector<1x32x8xbf16>
    %252 = vector.shape_cast %251 : vector<1x32x8xbf16> to vector<32x8xbf16>
    %cst_161 = arith.constant dense<0.000000e+00> : vector<8x8xf32>
    %253 = tpu.matmul %250, %252, %cst_161 {dimension_numbers = #tpu.dot_dimension_numbers<[1], [0], [0], [1], [0, 0, 1, 1], [], []>} : vector<8x32xbf16>, vector<32x8xbf16>, vector<8x8xf32> -> vector<8x8xf32>
    %254 = arith.addf %249, %253 : vector<8x8xf32>
    %255 = vector.extract_strided_slice %231 {offsets = [3, 0], sizes = [8, 32], strides = [1, 1]} : vector<12x32xbf16> to vector<8x32xbf16>
    %c2_162 = arith.constant 2 : index
    %c0_163 = arith.constant 0 : index
    %c0_164 = arith.constant 0 : index
    %256 = vector.load %arg4[%c2_162, %c0_163, %c0_164] : memref<3x32x8xbf16, #tpu.memory_space<vmem>>, vector<1x32x8xbf16>
    %257 = vector.shape_cast %256 : vector<1x32x8xbf16> to vector<32x8xbf16>
    %cst_165 = arith.constant dense<0.000000e+00> : vector<8x8xf32>
    %258 = tpu.matmul %255, %257, %cst_165 {dimension_numbers = #tpu.dot_dimension_numbers<[1], [0], [0], [1], [0, 0, 1, 1], [], []>} : vector<8x32xbf16>, vector<32x8xbf16>, vector<8x8xf32> -> vector<8x8xf32>
    %259 = arith.addf %254, %258 : vector<8x8xf32>
    %260 = vector.extract_strided_slice %3 {offsets = [1, 0], sizes = [1, 8], strides = [1, 1]} : vector<3x8xf32> to vector<1x8xf32>
    %261 = vector.shape_cast %260 : vector<1x8xf32> to vector<8xf32>
    %262 = vector.shape_cast %261 : vector<8xf32> to vector<1x8xf32>
    %263 = vector.broadcast %262 : vector<1x8xf32> to vector<8x8xf32>
    %264 = arith.addf %259, %263 : vector<8x8xf32>
    %265 = math.tanh %264 : vector<8x8xf32>
    %cst_166 = arith.constant dense<0.000000e+00> : vector<8x4xf32>
    %266 = tpu.matmul %265, %2, %cst_166 {dimension_numbers = #tpu.dot_dimension_numbers<[1], [0], [0], [1], [0, 0, 1, 1], [], []>} : vector<8x8xf32>, vector<8x4xf32>, vector<8x4xf32> -> vector<8x4xf32>
    %c0_167 = arith.constant 0 : index
    %c0_168 = arith.constant 0 : index
    %c40 = arith.constant 40 : index
    %267 = vector.load %arg8[%c0_167, %c0_168, %c40] : memref<1x8x48xf32, #tpu.memory_space<vmem>>, vector<1x8x4xf32>
    %268 = vector.shape_cast %267 : vector<1x8x4xf32> to vector<8x4xf32>
    %269 = vector.shape_cast %266 : vector<8x4xf32> to vector<1x8x4xf32>
    tpu.vector_store %arg8[%c0_167, %c0_168, %c40], %269 {strides = array<i32>} : memref<1x8x48xf32, #tpu.memory_space<vmem>>, vector<1x8x4xf32>,
    %270 = vector.extract_strided_slice %231 {offsets = [0, 0], sizes = [8, 32], strides = [1, 1]} : vector<12x32xbf16> to vector<8x32xbf16>
    %c0_169 = arith.constant 0 : index
    %c0_170 = arith.constant 0 : index
    %c0_171 = arith.constant 0 : index
    %271 = vector.load %arg5[%c0_169, %c0_170, %c0_171] : memref<5x32x8xbf16, #tpu.memory_space<vmem>>, vector<1x32x8xbf16>
    %272 = vector.shape_cast %271 : vector<1x32x8xbf16> to vector<32x8xbf16>
    %cst_172 = arith.constant dense<0.000000e+00> : vector<8x8xf32>
    %273 = tpu.matmul %270, %272, %cst_172 {dimension_numbers = #tpu.dot_dimension_numbers<[1], [0], [0], [1], [0, 0, 1, 1], [], []>} : vector<8x32xbf16>, vector<32x8xbf16>, vector<8x8xf32> -> vector<8x8xf32>
    %274 = vector.extract_strided_slice %231 {offsets = [1, 0], sizes = [8, 32], strides = [1, 1]} : vector<12x32xbf16> to vector<8x32xbf16>
    %c1_173 = arith.constant 1 : index
    %c0_174 = arith.constant 0 : index
    %c0_175 = arith.constant 0 : index
    %275 = vector.load %arg5[%c1_173, %c0_174, %c0_175] : memref<5x32x8xbf16, #tpu.memory_space<vmem>>, vector<1x32x8xbf16>
    %276 = vector.shape_cast %275 : vector<1x32x8xbf16> to vector<32x8xbf16>
    %cst_176 = arith.constant dense<0.000000e+00> : vector<8x8xf32>
    %277 = tpu.matmul %274, %276, %cst_176 {dimension_numbers = #tpu.dot_dimension_numbers<[1], [0], [0], [1], [0, 0, 1, 1], [], []>} : vector<8x32xbf16>, vector<32x8xbf16>, vector<8x8xf32> -> vector<8x8xf32>
    %278 = arith.addf %273, %277 : vector<8x8xf32>
    %279 = vector.extract_strided_slice %231 {offsets = [2, 0], sizes = [8, 32], strides = [1, 1]} : vector<12x32xbf16> to vector<8x32xbf16>
    %c2_177 = arith.constant 2 : index
    %c0_178 = arith.constant 0 : index
    %c0_179 = arith.constant 0 : index
    %280 = vector.load %arg5[%c2_177, %c0_178, %c0_179] : memref<5x32x8xbf16, #tpu.memory_space<vmem>>, vector<1x32x8xbf16>
    %281 = vector.shape_cast %280 : vector<1x32x8xbf16> to vector<32x8xbf16>
    %cst_180 = arith.constant dense<0.000000e+00> : vector<8x8xf32>
    %282 = tpu.matmul %279, %281, %cst_180 {dimension_numbers = #tpu.dot_dimension_numbers<[1], [0], [0], [1], [0, 0, 1, 1], [], []>} : vector<8x32xbf16>, vector<32x8xbf16>, vector<8x8xf32> -> vector<8x8xf32>
    %283 = arith.addf %278, %282 : vector<8x8xf32>
    %284 = vector.extract_strided_slice %231 {offsets = [3, 0], sizes = [8, 32], strides = [1, 1]} : vector<12x32xbf16> to vector<8x32xbf16>
    %c3_181 = arith.constant 3 : index
    %c0_182 = arith.constant 0 : index
    %c0_183 = arith.constant 0 : index
    %285 = vector.load %arg5[%c3_181, %c0_182, %c0_183] : memref<5x32x8xbf16, #tpu.memory_space<vmem>>, vector<1x32x8xbf16>
    %286 = vector.shape_cast %285 : vector<1x32x8xbf16> to vector<32x8xbf16>
    %cst_184 = arith.constant dense<0.000000e+00> : vector<8x8xf32>
    %287 = tpu.matmul %284, %286, %cst_184 {dimension_numbers = #tpu.dot_dimension_numbers<[1], [0], [0], [1], [0, 0, 1, 1], [], []>} : vector<8x32xbf16>, vector<32x8xbf16>, vector<8x8xf32> -> vector<8x8xf32>
    %288 = arith.addf %283, %287 : vector<8x8xf32>
    %289 = vector.extract_strided_slice %231 {offsets = [4, 0], sizes = [8, 32], strides = [1, 1]} : vector<12x32xbf16> to vector<8x32xbf16>
    %c4_185 = arith.constant 4 : index
    %c0_186 = arith.constant 0 : index
    %c0_187 = arith.constant 0 : index
    %290 = vector.load %arg5[%c4_185, %c0_186, %c0_187] : memref<5x32x8xbf16, #tpu.memory_space<vmem>>, vector<1x32x8xbf16>
    %291 = vector.shape_cast %290 : vector<1x32x8xbf16> to vector<32x8xbf16>
    %cst_188 = arith.constant dense<0.000000e+00> : vector<8x8xf32>
    %292 = tpu.matmul %289, %291, %cst_188 {dimension_numbers = #tpu.dot_dimension_numbers<[1], [0], [0], [1], [0, 0, 1, 1], [], []>} : vector<8x32xbf16>, vector<32x8xbf16>, vector<8x8xf32> -> vector<8x8xf32>
    %293 = arith.addf %288, %292 : vector<8x8xf32>
    %294 = vector.extract_strided_slice %3 {offsets = [2, 0], sizes = [1, 8], strides = [1, 1]} : vector<3x8xf32> to vector<1x8xf32>
    %295 = vector.shape_cast %294 : vector<1x8xf32> to vector<8xf32>
    %296 = vector.shape_cast %295 : vector<8xf32> to vector<1x8xf32>
    %297 = vector.broadcast %296 : vector<1x8xf32> to vector<8x8xf32>
    %298 = arith.addf %293, %297 : vector<8x8xf32>
    %299 = math.tanh %298 : vector<8x8xf32>
    %cst_189 = arith.constant dense<0.000000e+00> : vector<8x4xf32>
    %300 = tpu.matmul %299, %2, %cst_189 {dimension_numbers = #tpu.dot_dimension_numbers<[1], [0], [0], [1], [0, 0, 1, 1], [], []>} : vector<8x8xf32>, vector<8x4xf32>, vector<8x4xf32> -> vector<8x4xf32>
    %c0_190 = arith.constant 0 : index
    %c0_191 = arith.constant 0 : index
    %c44 = arith.constant 44 : index
    %301 = vector.load %arg8[%c0_190, %c0_191, %c44] : memref<1x8x48xf32, #tpu.memory_space<vmem>>, vector<1x8x4xf32>
    %302 = vector.shape_cast %301 : vector<1x8x4xf32> to vector<8x4xf32>
    %303 = vector.shape_cast %300 : vector<8x4xf32> to vector<1x8x4xf32>
    tpu.vector_store %arg8[%c0_190, %c0_191, %c44], %303 {strides = array<i32>} : memref<1x8x48xf32, #tpu.memory_space<vmem>>, vector<1x8x4xf32>,
    return
  }
  func.func @transform_0(%arg0: i32, %arg1: i32) -> (i32, i32, i32, i32) {
    %c0_i32 = arith.constant 0 : i32
    %c0_i32_0 = arith.constant 0 : i32
    %c0_i32_1 = arith.constant 0 : i32
    %c0_i32_2 = arith.constant 0 : i32
    return %c0_i32, %arg0, %c0_i32_0, %c0_i32_1 : i32, i32, i32, i32
  }
  func.func @transform_1(%arg0: i32, %arg1: i32) -> (i32, i32, i32) {
    %c0_i32 = arith.constant 0 : i32
    %c0_i32_0 = arith.constant 0 : i32
    %c0_i32_1 = arith.constant 0 : i32
    %c0_i32_2 = arith.constant 0 : i32
    return %c0_i32, %c0_i32_0, %c0_i32_1 : i32, i32, i32
  }
  func.func @transform_2(%arg0: i32, %arg1: i32) -> (i32, i32, i32) {
    %c0_i32 = arith.constant 0 : i32
    %c0_i32_0 = arith.constant 0 : i32
    %c0_i32_1 = arith.constant 0 : i32
    %c0_i32_2 = arith.constant 0 : i32
    return %c0_i32, %c0_i32_0, %c0_i32_1 : i32, i32, i32
  }
  func.func @transform_3(%arg0: i32, %arg1: i32) -> (i32, i32, i32) {
    %c0_i32 = arith.constant 0 : i32
    %c0_i32_0 = arith.constant 0 : i32
    %c0_i32_1 = arith.constant 0 : i32
    %c0_i32_2 = arith.constant 0 : i32
    return %c0_i32, %c0_i32_0, %c0_i32_1 : i32, i32, i32
  }
  func.func @transform_4(%arg0: i32, %arg1: i32) -> (i32, i32) {
    %c0_i32 = arith.constant 0 : i32
    %c0_i32_0 = arith.constant 0 : i32
    %c0_i32_1 = arith.constant 0 : i32
    return %c0_i32, %c0_i32_0 : i32, i32
  }
  func.func @transform_5(%arg0: i32, %arg1: i32) -> (i32, i32) {
    %c0_i32 = arith.constant 0 : i32
    %c0_i32_0 = arith.constant 0 : i32
    %c0_i32_1 = arith.constant 0 : i32
    return %c0_i32, %c0_i32_0 : i32, i32
  }
  func.func @transform_6(%arg0: i32, %arg1: i32) -> (i32, i32, i32) {
    %c0_i32 = arith.constant 0 : i32
    %c0_i32_0 = arith.constant 0 : i32
    return %arg0, %arg1, %c0_i32 : i32, i32, i32
  }
}

</mosaic_0001>

<llo_original>
// kernel: tpu_custom_call.1
$region0: #{tpu_custom_call.1}
  #allocation0 [shape = 'u32[]', space=smem, size = 0x4, offset = 0x4, fixed_abs, tag = 'smem constant byte address 0x4 - core index']
  #allocation1 [shape = 'u32[72,128]{1,0:T(1,128)}', space=vmem, size = 0x9000, scoped, tag = 'internal scratch']
  %s0 = inlined_call_operand.vmem [shape: bf16[4,2,12,32], index: 0, kind: input, shape index: {}]
  %s1 = inlined_call_operand.vmem [shape: bf16[1,32,8], index: 1, kind: input, shape index: {}]
  %s2 = inlined_call_operand.vmem [shape: bf16[3,32,8], index: 2, kind: input, shape index: {}]
  %s3 = inlined_call_operand.vmem [shape: bf16[5,32,8], index: 3, kind: input, shape index: {}]
  %s4 = inlined_call_operand.vmem [shape: f32[3,8], index: 4, kind: input, shape index: {}]
  %s5 = inlined_call_operand.vmem [shape: f32[8,4], index: 5, kind: input, shape index: {}]
  %s6 = inlined_call_operand.hbm [shape: f32[2,8,48], index: 6, kind: output, shape index: {}]
  %s7 = sld [smem:[#allocation0]]
  $region98: #{tpu_custom_call.1} parent=0
    _
  %s9 = ssub.s32 1, %s7
  %s10 = scalar_select 0, %s9, %s7
  $region1: #{tpu_custom_call.1} parent=0
    #allocation2 [shape = 'u8[32768]{0}', space=vmem, size = 0x8000, scoped, tag = 'input window, operand 0']
    #allocation3 [shape = 'u8[8192]{0}', space=vmem, size = 0x2000, scoped, tag = 'output window, operand 0']
    #allocation4 [shape = 's32[2]{0}', space=sflag, size = 0x8, scoped, tag = 'scoped memory for tpu_custom_call.1']
    %11 = vsyncpa [#allocation4], 0
    %s12 = scalar_lea.sflag [#allocation4], 1
    %13 = vsyncpa %s12, 0
    loop: start=0, step=1, limit=4
    $region2: #{tpu_custom_call.1} parent=1 // loop_pre_header
      _
    $region3: #{tpu_custom_call.1} parent=1 // loop_header
      %s15 = sphi 0, %s19
      %p16 = scmp.ge.s32.totalorder %s15, 4
      %s22 = sphi 0, %s34
      %s23 = sphi 0, %s30
      %s24 = sphi 0, %s22
      %s25 = sphi 0, %s23
      %s26 = sphi 0, %s24
      %s27 = sphi 0, %s25
      %s37 = sphi 0, %s39
      %s40 = sphi 0, %s37
      %s41 = sphi 0, %s40
      %s57 = sphi 0, %s41
      %s61 = sphi 0, %s61
      %s63 = sphi 0, %s61
      %s64 = sphi 0, %s63
      %s78 = sphi 0, %s64
      %s82 = sphi 0, %s82
      %s84 = sphi 0, %s82
      %s85 = sphi 0, %s84
      %s99 = sphi 0, %s85
      %s103 = sphi 0, %s103
      %s105 = sphi 0, %s103
      %s106 = sphi 0, %s105
      %s120 = sphi 0, %s106
      %s124 = sphi 0, %s124
      %s126 = sphi 0, %s124
      %s127 = sphi 0, %s126
      %s141 = sphi 0, %s127
      %s145 = sphi 0, %s145
      %s147 = sphi 0, %s145
      %s148 = sphi 0, %s147
      %s162 = sphi 0, %s148
      %s170 = sphi 0, %s172
      %s173 = sphi 0, %s170
      %s174 = sphi 0, %s173
      %s190 = sphi 0, %s174
    $region4: #{tpu_custom_call.1} parent=1 // loop_header_branch
      %18 = sbr.rel (%p16) target = $region8
    $region5: #{tpu_custom_call.1} parent=1 // loop_body
      %s20 = ssub.s32 %s15, 1
      %s21 = ssub.s32 %s15, 2
      %s28 = sadd.s32 1, %s23
      %p29 = scmp.ge.s32.totalorder %s28, 1
      %s30 = scalar_select %p29, 0, %s28
      %s31 = sadd.s32 1, %s22
      %s32 = scalar_select %p29, %s31, %s22
      %p33 = scmp.ge.s32.totalorder %s32, 2
      %s34 = scalar_select %p33, 0, %s32
      %s35 = ssub.s32 %s22, %s34
      %p36 = scmp.eq.s32.totalorder %s35, 0
      %s38 = sadd.s32 %s37, 1
      %s39 = scalar_select %p36, %s37, %s38
      %p42 = pneg %p36
      %p43 = scmp.eq.s32.totalorder %s15, 1
      %p44 = por %p42, %p43
      %p45 = scmp.ne.s32.totalorder %s37, %s40
      %p46 = scmp.eq.s32.totalorder %s15, 0
      %p47 = por %p45, %p46
      %p48 = scmp.ne.s32.totalorder %s37, %s40
      %p49 = scmp.eq.s32.totalorder %s20, 1
      %p50 = por %p48, %p49
      %p51 = scmp.ne.s32.totalorder %s40, %s41
      %p52 = scmp.eq.s32.totalorder %s20, 0
      %p53 = por %p51, %p52
      %p54 = scmp.ne.s32.totalorder %s40, %s41
      %p55 = scmp.eq.s32.totalorder %s21, 1
      %p56 = por %p54, %p55
      %p58 = scmp.ne.s32.totalorder %s41, %s57
      %p59 = scmp.eq.s32.totalorder %s21, 0
      %p60 = por %p58, %p59
      %s62 = sadd.s32 %s61, 1
      %p65 = scmp.eq.s32.totalorder %s15, 1
      %p66 = scmp.ne.s32.totalorder %s61, %s63
      %p67 = scmp.eq.s32.totalorder %s15, 0
      %p68 = por %p66, %p67
      %p69 = scmp.ne.s32.totalorder %s61, %s63
      %p70 = scmp.eq.s32.totalorder %s20, 1
      %p71 = por %p69, %p70
      %p72 = scmp.ne.s32.totalorder %s63, %s64
      %p73 = scmp.eq.s32.totalorder %s20, 0
      %p74 = por %p72, %p73
      %p75 = scmp.ne.s32.totalorder %s63, %s64
      %p76 = scmp.eq.s32.totalorder %s21, 1
      %p77 = por %p75, %p76
      %p79 = scmp.ne.s32.totalorder %s64, %s78
      %p80 = scmp.eq.s32.totalorder %s21, 0
      %p81 = por %p79, %p80
      %s83 = sadd.s32 %s82, 1
      %p86 = scmp.eq.s32.totalorder %s15, 1
      %p87 = scmp.ne.s32.totalorder %s82, %s84
      %p88 = scmp.eq.s32.totalorder %s15, 0
      %p89 = por %p87, %p88
      %p90 = scmp.ne.s32.totalorder %s82, %s84
      %p91 = scmp.eq.s32.totalorder %s20, 1
      %p92 = por %p90, %p91
      %p93 = scmp.ne.s32.totalorder %s84, %s85
      %p94 = scmp.eq.s32.totalorder %s20, 0
      %p95 = por %p93, %p94
      %p96 = scmp.ne.s32.totalorder %s84, %s85
      %p97 = scmp.eq.s32.totalorder %s21, 1
      %p98 = por %p96, %p97
      %p100 = scmp.ne.s32.totalorder %s85, %s99
      %p101 = scmp.eq.s32.totalorder %s21, 0
      %p102 = por %p100, %p101
      %s104 = sadd.s32 %s103, 1
      %p107 = scmp.eq.s32.totalorder %s15, 1
      %p108 = scmp.ne.s32.totalorder %s103, %s105
      %p109 = scmp.eq.s32.totalorder %s15, 0
      %p110 = por %p108, %p109
      %p111 = scmp.ne.s32.totalorder %s103, %s105
      %p112 = scmp.eq.s32.totalorder %s20, 1
      %p113 = por %p111, %p112
      %p114 = scmp.ne.s32.totalorder %s105, %s106
      %p115 = scmp.eq.s32.totalorder %s20, 0
      %p116 = por %p114, %p115
      %p117 = scmp.ne.s32.totalorder %s105, %s106
      %p118 = scmp.eq.s32.totalorder %s21, 1
      %p119 = por %p117, %p118
      %p121 = scmp.ne.s32.totalorder %s106, %s120
      %p122 = scmp.eq.s32.totalorder %s21, 0
      %p123 = por %p121, %p122
      %s125 = sadd.s32 %s124, 1
      %p128 = scmp.eq.s32.totalorder %s15, 1
      %p129 = scmp.ne.s32.totalorder %s124, %s126
      %p130 = scmp.eq.s32.totalorder %s15, 0
      %p131 = por %p129, %p130
      %p132 = scmp.ne.s32.totalorder %s124, %s126
      %p133 = scmp.eq.s32.totalorder %s20, 1
      %p134 = por %p132, %p133
      %p135 = scmp.ne.s32.totalorder %s126, %s127
      %p136 = scmp.eq.s32.totalorder %s20, 0
      %p137 = por %p135, %p136
      %p138 = scmp.ne.s32.totalorder %s126, %s127
      %p139 = scmp.eq.s32.totalorder %s21, 1
      %p140 = por %p138, %p139
      %p142 = scmp.ne.s32.totalorder %s127, %s141
      %p143 = scmp.eq.s32.totalorder %s21, 0
      %p144 = por %p142, %p143
      %s146 = sadd.s32 %s145, 1
      %p149 = scmp.eq.s32.totalorder %s15, 1
      %p150 = scmp.ne.s32.totalorder %s145, %s147
      %p151 = scmp.eq.s32.totalorder %s15, 0
      %p152 = por %p150, %p151
      %p153 = scmp.ne.s32.totalorder %s145, %s147
      %p154 = scmp.eq.s32.totalorder %s20, 1
      %p155 = por %p153, %p154
      %p156 = scmp.ne.s32.totalorder %s147, %s148
      %p157 = scmp.eq.s32.totalorder %s20, 0
      %p158 = por %p156, %p157
      %p159 = scmp.ne.s32.totalorder %s147, %s148
      %p160 = scmp.eq.s32.totalorder %s21, 1
      %p161 = por %p159, %p160
      %p163 = scmp.ne.s32.totalorder %s148, %s162
      %p164 = scmp.eq.s32.totalorder %s21, 0
      %p165 = por %p163, %p164
      %s166 = ssub.s32 %s22, %s34
      %s167 = ssub.s32 %s23, %s30
      %s168 = sor.u32 %s166, %s167
      %p169 = scmp.eq.s32.totalorder %s168, 0
      %s171 = sadd.s32 %s170, 1
      %s172 = scalar_select %p169, %s170, %s171
      %p175 = pneg %p169
      %p176 = scmp.eq.s32.totalorder %s15, 1
      %p177 = por %p175, %p176
      %p178 = scmp.ne.s32.totalorder %s170, %s173
      %p179 = scmp.eq.s32.totalorder %s15, 0
      %p180 = por %p178, %p179
      %p181 = scmp.ne.s32.totalorder %s170, %s173
      %p182 = scmp.eq.s32.totalorder %s20, 1
      %p183 = por %p181, %p182
      %p184 = scmp.ne.s32.totalorder %s173, %s174
      %p185 = scmp.eq.s32.totalorder %s20, 0
      %p186 = por %p184, %p185
      %p187 = scmp.ne.s32.totalorder %s173, %s174
      %p188 = scmp.eq.s32.totalorder %s21, 1
      %p189 = por %p187, %p188
      %p191 = scmp.ne.s32.totalorder %s174, %s190
      %p192 = scmp.eq.s32.totalorder %s21, 0
      %p193 = por %p191, %p192
      %p194 = scmp.le.s32.totalorder 1, %s15
      %p195 = scmp.lt.s32.totalorder %s15, 3
      %p196 = pnand %p194, %p195
      %p197 = pneg %p196
      // Predicated region
      $region9: #{tpu_custom_call.1} parent=5 // pred_check
        _
      $region10: #{tpu_custom_call.1} parent=5 // pred_check_branch
        %199 = sbr.rel (%p196) target = $region12
      $region11: #{tpu_custom_call.1} parent=5 // pred_region
        %s200 = ssub.s32 %s15, 1
        // Predicated region
        $region13: #{tpu_custom_call.1} parent=11 // pred_check
          %p201 = pneg %p74
        $region14: #{tpu_custom_call.1} parent=11 // pred_check_branch
          %203 = sbr.rel (%p201) target = $region16
        $region15: #{tpu_custom_call.1} parent=11 // pred_region
          _
        $region16: #{tpu_custom_call.1} parent=11 // pred_fallthru
          _
        // Predicated region
        $region17: #{tpu_custom_call.1} parent=11 // pred_check
          %p204 = pneg %p95
        $region18: #{tpu_custom_call.1} parent=11 // pred_check_branch
          %206 = sbr.rel (%p204) target = $region20
        $region19: #{tpu_custom_call.1} parent=11 // pred_region
          _
        $region20: #{tpu_custom_call.1} parent=11 // pred_fallthru
          _
        // Predicated region
        $region21: #{tpu_custom_call.1} parent=11 // pred_check
          %p207 = pneg %p116
        $region22: #{tpu_custom_call.1} parent=11 // pred_check_branch
          %209 = sbr.rel (%p207) target = $region24
        $region23: #{tpu_custom_call.1} parent=11 // pred_region
          _
        $region24: #{tpu_custom_call.1} parent=11 // pred_fallthru
          _
        // Predicated region
        $region25: #{tpu_custom_call.1} parent=11 // pred_check
          %p210 = pneg %p137
        $region26: #{tpu_custom_call.1} parent=11 // pred_check_branch
          %212 = sbr.rel (%p210) target = $region28
        $region27: #{tpu_custom_call.1} parent=11 // pred_region
          _
        $region28: #{tpu_custom_call.1} parent=11 // pred_fallthru
          _
        // Predicated region
        $region29: #{tpu_custom_call.1} parent=11 // pred_check
          %p213 = pneg %p158
        $region30: #{tpu_custom_call.1} parent=11 // pred_check_branch
          %215 = sbr.rel (%p213) target = $region32
        $region31: #{tpu_custom_call.1} parent=11 // pred_region
          _
        $region32: #{tpu_custom_call.1} parent=11 // pred_fallthru
          _
      $region12: #{tpu_custom_call.1} parent=5 // pred_fallthru
        _
      %p216 = scmp.lt.s32.totalorder %s15, 2
      // Predicated region
      $region33: #{tpu_custom_call.1} parent=5 // pred_check
        %p217 = pneg %p216
      $region34: #{tpu_custom_call.1} parent=5 // pred_check_branch
        %219 = sbr.rel (%p217) target = $region36
      $region35: #{tpu_custom_call.1} parent=5 // pred_region
        // Predicated region
        $region37: #{tpu_custom_call.1} parent=35 // pred_check
          %p220 = pneg %p47
        $region38: #{tpu_custom_call.1} parent=35 // pred_check_branch
          %222 = sbr.rel (%p220) target = $region40
        $region39: #{tpu_custom_call.1} parent=35 // pred_region
          %s223 = sand.u32 %s37, 1
          %s224 = sand.u32 %s37, 1
          %s225 = smul.addr %s224, 32
          %s226 = scalar_lea.vmem [#allocation2], %s225
          %s227 = smul.addr %s22, 2
          %s228 = smul.addr %s227, 4
          %s229 = scalar_lea.vmem %s0, %s228
          // Predicated region
          $region41: #{tpu_custom_call.1} parent=39 // pred_check
            _
          $region42: #{tpu_custom_call.1} parent=39 // pred_check_branch
            %231 = sbr.rel (0) target = $region44
          $region43: #{tpu_custom_call.1} parent=39 // pred_region
            // Predicated region
            $region45: #{tpu_custom_call.1} parent=43 // pred_check
              _
            $region46: #{tpu_custom_call.1} parent=43 // pred_check_branch
              %233 = sbr.rel target = $region48
            $region47: #{tpu_custom_call.1} parent=43 // pred_region
              // Predicated region
              $region60: #{tpu_custom_call.1} parent=47 // pred_check
                _
              $region61: #{tpu_custom_call.1} parent=47 // pred_check_branch
                %263 = sbr.rel (0) target = $region63
              $region62: #{tpu_custom_call.1} parent=47 // pred_region
                loop: start=0, step=1, limit=1
                $region64: #{tpu_custom_call.1} parent=62 // loop_pre_header
                  _
                $region65: #{tpu_custom_call.1} parent=62 // loop_header
                  %s265 = sphi 0, %s269
                  %p266 = scmp.ge.s32.totalorder %s265, 1
                  %s270 = sphi %s229, %s229
                  %s271 = sphi %s226, %s226
                $region66: #{tpu_custom_call.1} parent=62 // loop_header_branch
                  %268 = sbr.rel (%p266) target = $region70
                $region67: #{tpu_custom_call.1} parent=62 // loop_body
                  _
                $region68: #{tpu_custom_call.1} parent=62 // loop_footer
                  %s269 = sadd.s32 1, %s265
                $region69: #{tpu_custom_call.1} parent=62 // loop_footer_branch
                  %264 = sbr.rel target = $region65
                $region70: #{tpu_custom_call.1} parent=62 // loop_exit
                  _
                %s273 = ssub.s32 16, 1
                loop: start=0, step=1, limit=1
                $region71: #{tpu_custom_call.1} parent=62 // loop_pre_header
                  _
                $region72: #{tpu_custom_call.1} parent=62 // loop_header
                  %s275 = sphi 0, %s279
                  %p276 = scmp.ge.s32.totalorder %s275, 1
                  %s280 = sphi %s229, %s229
                  %s281 = sphi %s226, %s226
                $region73: #{tpu_custom_call.1} parent=62 // loop_header_branch
                  %278 = sbr.rel (%p276) target = $region77
                $region74: #{tpu_custom_call.1} parent=62 // loop_body
                  %v282 = vld [vmem:[%s280] sm:%s273]
                  %283 = vst [vmem:[%s281] sm:%s273] %v282
                  %v284 = vld [vmem:[%s280 + $0x4] sm:%s273]
                  %285 = vst [vmem:[%s281 + $0x4] sm:%s273] %v284
                  %v286 = vld [vmem:[%s280 + $0x10] sm:%s273]
                  %287 = vst [vmem:[%s281 + $0x8] sm:%s273] %v286
                  %v288 = vld [vmem:[%s280 + $0x14] sm:%s273]
                  %289 = vst [vmem:[%s281 + $0xc] sm:%s273] %v288
                  %v290 = vld [vmem:[%s280 + $0x20] sm:%s273]
                  %291 = vst [vmem:[%s281 + $0x10] sm:%s273] %v290
                  %v292 = vld [vmem:[%s280 + $0x24] sm:%s273]
                  %293 = vst [vmem:[%s281 + $0x14] sm:%s273] %v292
                  %v294 = vld [vmem:[%s280 + $0x30] sm:%s273]
                  %295 = vst [vmem:[%s281 + $0x18] sm:%s273] %v294
                  %v296 = vld [vmem:[%s280 + $0x34] sm:%s273]
                  %297 = vst [vmem:[%s281 + $0x1c] sm:%s273] %v296
                $region75: #{tpu_custom_call.1} parent=62 // loop_footer
                  %s279 = sadd.s32 1, %s275
                $region76: #{tpu_custom_call.1} parent=62 // loop_footer_branch
                  %274 = sbr.rel target = $region72
                $region77: #{tpu_custom_call.1} parent=62 // loop_exit
                  _
              $region63: #{tpu_custom_call.1} parent=47 // pred_fallthru
                _
            $region48: #{tpu_custom_call.1} parent=43 // pred_fallthru
              _
            // Predicated region
            $region49: #{tpu_custom_call.1} parent=43 // pred_check
              _
            $region50: #{tpu_custom_call.1} parent=43 // pred_check_branch
              %235 = sbr.rel (0) target = $region52
            $region51: #{tpu_custom_call.1} parent=43 // pred_region
              %s237 = ssub.s32 16, 1
              loop: start=0, step=1, limit=1
              $region53: #{tpu_custom_call.1} parent=51 // loop_pre_header
                _
              $region54: #{tpu_custom_call.1} parent=51 // loop_header
                %s239 = sphi 0, %s243
                %p240 = scmp.ge.s32.totalorder %s239, 1
                %s244 = sphi %s229, %s229
                %s245 = sphi %s226, %s226
              $region55: #{tpu_custom_call.1} parent=51 // loop_header_branch
                %242 = sbr.rel (%p240) target = $region59
              $region56: #{tpu_custom_call.1} parent=51 // loop_body
                %v246 = vld [vmem:[%s244] sm:%s237]
                %247 = vst [vmem:[%s245] sm:%s237] %v246
                %v248 = vld [vmem:[%s244 + $0x4] sm:%s237]
                %249 = vst [vmem:[%s245 + $0x4] sm:%s237] %v248
                %v250 = vld [vmem:[%s244 + $0x10] sm:%s237]
                %251 = vst [vmem:[%s245 + $0x8] sm:%s237] %v250
                %v252 = vld [vmem:[%s244 + $0x14] sm:%s237]
                %253 = vst [vmem:[%s245 + $0xc] sm:%s237] %v252
                %v254 = vld [vmem:[%s244 + $0x20] sm:%s237]
                %255 = vst [vmem:[%s245 + $0x10] sm:%s237] %v254
                %v256 = vld [vmem:[%s244 + $0x24] sm:%s237]
                %257 = vst [vmem:[%s245 + $0x14] sm:%s237] %v256
                %v258 = vld [vmem:[%s244 + $0x30] sm:%s237]
                %259 = vst [vmem:[%s245 + $0x18] sm:%s237] %v258
                %v260 = vld [vmem:[%s244 + $0x34] sm:%s237]
                %261 = vst [vmem:[%s245 + $0x1c] sm:%s237] %v260
              $region57: #{tpu_custom_call.1} parent=51 // loop_footer
                %s243 = sadd.s32 1, %s239
              $region58: #{tpu_custom_call.1} parent=51 // loop_footer_branch
                %238 = sbr.rel target = $region54
              $region59: #{tpu_custom_call.1} parent=51 // loop_exit
                _
            $region52: #{tpu_custom_call.1} parent=43 // pred_fallthru
              _
          $region44: #{tpu_custom_call.1} parent=39 // pred_fallthru
            _
          %298 = vnop
        $region40: #{tpu_custom_call.1} parent=35 // pred_fallthru
          _
      $region36: #{tpu_custom_call.1} parent=5 // pred_fallthru
        _
      %p299 = scmp.le.s32.totalorder 1, %s15
      %p300 = scmp.lt.s32.totalorder %s15, 3
      %p301 = pnand %p299, %p300
      %p302 = pneg %p301
      // Predicated region
      $region78: #{tpu_custom_call.1} parent=5 // pred_check
        _
      $region79: #{tpu_custom_call.1} parent=5 // pred_check_branch
        %304 = sbr.rel (%p301) target = $region81
      $region80: #{tpu_custom_call.1} parent=5 // pred_region
        %s305 = ssub.s32 %s15, 1
        %s306 = sand.u32 %s40, 1
        %s307 = sand.u32 %s40, 1
        %s308 = smul.addr %s307, 32
        %s309 = scalar_lea.vmem [#allocation2], %s308
        // Predicated region
        $region82: #{tpu_custom_call.1} parent=80 // pred_check
          %p310 = pneg %p53
        $region83: #{tpu_custom_call.1} parent=80 // pred_check_branch
          %312 = sbr.rel (%p310) target = $region85
        $region84: #{tpu_custom_call.1} parent=80 // pred_region
          _
        $region85: #{tpu_custom_call.1} parent=80 // pred_fallthru
          _
        %s313 = sand.u32 %s40, 1
        %s314 = sand.u32 %s40, 1
        %s315 = smul.addr %s314, 32
        %s316 = scalar_lea.vmem [#allocation2], %s315
        %p317 = pneg %p53
        %p318 = pneg %p50
        %p319 = pneg %p74
        %p320 = pneg %p71
        %p321 = pneg %p95
        %p322 = pneg %p92
        %p323 = pneg %p116
        %p324 = pneg %p113
        %p325 = pneg %p137
        %p326 = pneg %p134
        %p327 = pneg %p158
        %p328 = pneg %p155
        %p329 = pneg %p186
        %p330 = pneg %p183
        %s331 = sand.u32 %s173, 1
        %s332 = scalar_lea.sflag [#allocation4], %s331
        %s333 = sand.u32 %s173, 1
        %s334 = smul.addr %s333, 8
        %s335 = scalar_lea.vmem [#allocation3], %s334
        %s337 = smul.u32 %s25, 8
        %v338 = vld [vmem:[%s5] sm:$0xff]
        %v339 = vld [vmem:[%s4] sm:$0x7]
        %s340 = sshra.s32 %s337, 3
        %s341 = sand.u32 %s337, 7
        %s342 = smul.addr %s340, 4
        %s343 = scalar_lea.vmem %s309, %s342 [#allocation2]
        %v344 = vld [vmem:[%s343] sm:$0xf]
        %v345 = vld [vmem:[%s343 + $0x4] sm:$0x3]
        %v346 = vld [vmem:[%s1] sm:$0xf]
        %v347 = vld [vmem:[%s1 + $0x4] sm:$0xf]
        %v348 = vld [vmem:[%s1 + $0x8] sm:$0xf]
        %v349 = vld [vmem:[%s1 + $0xc] sm:$0xf]
        %v350 = vperm.slane %v339, 0
        %v353 = vunpack.c.l.b16 %v344
        %v354 = vunpack.c.l.b16 %v345
        %v355 = vpack.c.b16 %v354, %v353
        %v356 = vrot.slane %v355, 1
        %v361 = vunpack.c.l.b16 %v346
        %v362 = vunpack.c.l.b16 %v347
        %v363 = vunpack.c.l.b16 %v348
        %v364 = vunpack.c.l.b16 %v349
        %v365 = vpack.c.b16 %v362, %v361
        %v366 = vpack.c.b16 %v364, %v363
        %vm369 = vcmask 261120
        %v371 = vsel %vm369, %v356, 0
        %373 = vmatpush.bf16.msra.mxu0 0
        %374 = vmatpush.bf16.msra.mxu0 0
        %375 = vmatpush.bf16.msra.mxu0 0
        %376 = vmatpush.bf16.msra.mxu0 0
        %377 = vmatpush.bf16.msra.mxu0 0
        %378 = vmatpush.bf16.msra.mxu0 0
        %379 = vmatpush.bf16.msra.mxu0 %v366
        %380 = vmatpush.bf16.msra.mxu0 %v365
        %381 = vmatmul.bf16.gmra.mxu0 %v371
        %v382 = vpop.f32.mrf.mxu0
        %v383 = vadd.f32 %v350, %v382
        %v384 = vpop.f32.mrf.mxu0
        %385 = vdwg.mxu0
        %v386 = vtanh.pop %v383
        %vm387 = vcmask 64512
        %v389 = vsel %vm387, %v386, 0
        %391 = vmatpush.msra.mxu0 0.0
        %392 = vmatpush.msra.mxu0 0.0
        %393 = vmatpush.msra.mxu0 0.0
        %394 = vmatpush.msra.mxu0 0.0
        %395 = vmatpush.msra.mxu0 0.0
        %396 = vmatpush.msra.mxu0 0.0
        %397 = vmatpush.msra.mxu0 0.0
        %398 = vmatpush.msra.mxu0 0.0
        %399 = vmatpush.msra.mxu0 0.0
        %400 = vmatpush.msra.mxu0 0.0
        %401 = vmatpush.msra.mxu0 0.0
        %402 = vmatpush.msra.mxu0 0.0
        %403 = vmatpush.msra.mxu0 0.0
        %404 = vmatpush.msra.mxu0 0.0
        %405 = vmatpush.msra.mxu0 0.0
        %406 = vmatpush.msra.mxu0 %v338
        %407 = vmatmul.f32.gmra.mxu0 %v389
        %v408 = vpop.f32.mrf.mxu0
        %v409 = vadd.f32 0.0, %v408
        %410 = vdwg.mxu0
        %vm411 = vcmask 31744
        %412 = vst.msk [vmem:[%s335] sm:$0xff] %vm411, %v409
        %v413 = vld [vmem:[%s2] sm:$0xf]
        %v414 = vld [vmem:[%s2 + $0x4] sm:$0xf]
        %v415 = vld [vmem:[%s2 + $0x8] sm:$0xf]
        %v416 = vld [vmem:[%s2 + $0xc] sm:$0xf]
        %s417 = scalar_lea.vmem %s2, 16
        %v418 = vld [vmem:[%s417] sm:$0xf]
        %v419 = vld [vmem:[%s417 + $0x4] sm:$0xf]
        %v420 = vld [vmem:[%s417 + $0x8] sm:$0xf]
        %v421 = vld [vmem:[%s417 + $0xc] sm:$0xf]
        %v426 = vunpack.c.l.b16 %v418
        %v427 = vunpack.c.l.b16 %v419
        %v428 = vunpack.c.l.b16 %v420
        %v429 = vunpack.c.l.b16 %v421
        %v430 = vpack.c.b16 %v427, %v426
        %v431 = vpack.c.b16 %v429, %v428
        %434 = vmatpush.bf16.msra.mxu0 0
        %435 = vmatpush.bf16.msra.mxu0 0
        %436 = vmatpush.bf16.msra.mxu0 0
        %437 = vmatpush.bf16.msra.mxu0 0
        %438 = vmatpush.bf16.msra.mxu0 0
        %439 = vmatpush.bf16.msra.mxu0 0
        %440 = vmatpush.bf16.msra.mxu0 %v431
        %441 = vmatpush.bf16.msra.mxu0 %v430
        %442 = vmatmul.bf16.gmra.mxu0 %v371
        %v443 = vpop.f32.mrf.mxu0
        %v444 = vadd.f32 0.0, %v443
        %v445 = vpop.f32.mrf.mxu0
        %446 = vdwg.mxu0
        %v448 = vshrl.u32 %v355, 16
        %v450 = vshll.u32 %v355, 16
        %v452 = vrot.slane %v450, 1
        %v453 = vor.u32 %v448, %v452
        %v458 = vunpack.c.l.b16 %v413
        %v459 = vunpack.c.l.b16 %v414
        %v460 = vunpack.c.l.b16 %v415
        %v461 = vunpack.c.l.b16 %v416
        %v462 = vpack.c.b16 %v459, %v458
        %v463 = vpack.c.b16 %v461, %v460
        %v467 = vsel %vm369, %v453, 0
        %469 = vmatpush.bf16.msra.mxu0 0
        %470 = vmatpush.bf16.msra.mxu0 0
        %471 = vmatpush.bf16.msra.mxu0 0
        %472 = vmatpush.bf16.msra.mxu0 0
        %473 = vmatpush.bf16.msra.mxu0 0
        %474 = vmatpush.bf16.msra.mxu0 0
        %475 = vmatpush.bf16.msra.mxu0 %v463
        %476 = vmatpush.bf16.msra.mxu0 %v462
        %477 = vmatmul.bf16.gmra.mxu0 %v467
        %v478 = vpop.f32.mrf.mxu0
        %v479 = vadd.f32 %v444, %v478
        %v480 = vpop.f32.mrf.mxu0
        %481 = vdwg.mxu0
        %s482 = scalar_lea.vmem %s2, 32
        %v483 = vld [vmem:[%s482] sm:$0xf]
        %v484 = vld [vmem:[%s482 + $0x4] sm:$0xf]
        %v485 = vld [vmem:[%s482 + $0x8] sm:$0xf]
        %v486 = vld [vmem:[%s482 + $0xc] sm:$0xf]
        %v487 = vrot.slane %v448, 1
        %v488 = vrot.slane %v450, 2
        %v489 = vor.u32 %v487, %v488
        %v494 = vunpack.c.l.b16 %v483
        %v495 = vunpack.c.l.b16 %v484
        %v496 = vunpack.c.l.b16 %v485
        %v497 = vunpack.c.l.b16 %v486
        %v498 = vpack.c.b16 %v495, %v494
        %v499 = vpack.c.b16 %v497, %v496
        %v503 = vsel %vm369, %v489, 0
        %505 = vmatpush.bf16.msra.mxu0 0
        %506 = vmatpush.bf16.msra.mxu0 0
        %507 = vmatpush.bf16.msra.mxu0 0
        %508 = vmatpush.bf16.msra.mxu0 0
        %509 = vmatpush.bf16.msra.mxu0 0
        %510 = vmatpush.bf16.msra.mxu0 0
        %511 = vmatpush.bf16.msra.mxu0 %v499
        %512 = vmatpush.bf16.msra.mxu0 %v498
        %513 = vmatmul.bf16.gmra.mxu0 %v503
        %v514 = vpop.f32.mrf.mxu0
        %v515 = vadd.f32 0.0, %v514
        %v516 = vpop.f32.mrf.mxu0
        %517 = vdwg.mxu0
        %v518 = vadd.f32 %v479, %v515
        %v519 = vperm.slane %v339, 1
        %v520 = vadd.f32 %v518, %v519
        %v521 = vtanh.pop %v520
        %v523 = vsel %vm387, %v521, 0
        %525 = vmatpush.msra.mxu0 0.0
        %526 = vmatpush.msra.mxu0 0.0
        %527 = vmatpush.msra.mxu0 0.0
        %528 = vmatpush.msra.mxu0 0.0
        %529 = vmatpush.msra.mxu0 0.0
        %530 = vmatpush.msra.mxu0 0.0
        %531 = vmatpush.msra.mxu0 0.0
        %532 = vmatpush.msra.mxu0 0.0
        %533 = vmatpush.msra.mxu0 0.0
        %534 = vmatpush.msra.mxu0 0.0
        %535 = vmatpush.msra.mxu0 0.0
        %536 = vmatpush.msra.mxu0 0.0
        %537 = vmatpush.msra.mxu0 0.0
        %538 = vmatpush.msra.mxu0 0.0
        %539 = vmatpush.msra.mxu0 0.0
        %540 = vmatpush.msra.mxu0 %v338
        %541 = vmatmul.f32.gmra.mxu0 %v523
        %v542 = vpop.f32.mrf.mxu0
        %v543 = vadd.f32 0.0, %v542
        %544 = vdwg.mxu0
        %546 = vrot.lane.b32.xlu0 %v543, 4
        %v547 = vpop.permute.xlu0 %546
        %vm549 = vcmask 64544
        %550 = vst.msk [vmem:[%s335] sm:$0xff] %vm549, %v547
        %v551 = vld [vmem:[%s3] sm:$0xf]
        %v552 = vld [vmem:[%s3 + $0x4] sm:$0xf]
        %v553 = vld [vmem:[%s3 + $0x8] sm:$0xf]
        %v554 = vld [vmem:[%s3 + $0xc] sm:$0xf]
        %s555 = scalar_lea.vmem %s3, 16
        %v556 = vld [vmem:[%s555] sm:$0xf]
        %v557 = vld [vmem:[%s555 + $0x4] sm:$0xf]
        %v558 = vld [vmem:[%s555 + $0x8] sm:$0xf]
        %v559 = vld [vmem:[%s555 + $0xc] sm:$0xf]
        %v564 = vunpack.c.l.b16 %v556
        %v565 = vunpack.c.l.b16 %v557
        %v566 = vunpack.c.l.b16 %v558
        %v567 = vunpack.c.l.b16 %v559
        %v568 = vpack.c.b16 %v565, %v564
        %v569 = vpack.c.b16 %v567, %v566
        %572 = vmatpush.bf16.msra.mxu0 0
        %573 = vmatpush.bf16.msra.mxu0 0
        %574 = vmatpush.bf16.msra.mxu0 0
        %575 = vmatpush.bf16.msra.mxu0 0
        %576 = vmatpush.bf16.msra.mxu0 0
        %577 = vmatpush.bf16.msra.mxu0 0
        %578 = vmatpush.bf16.msra.mxu0 %v569
        %579 = vmatpush.bf16.msra.mxu0 %v568
        %580 = vmatmul.bf16.gmra.mxu0 %v467
        %v581 = vpop.f32.mrf.mxu0
        %v582 = vadd.f32 0.0, %v581
        %v583 = vpop.f32.mrf.mxu0
        %584 = vdwg.mxu0
        %v589 = vunpack.c.l.b16 %v551
        %v590 = vunpack.c.l.b16 %v552
        %v591 = vunpack.c.l.b16 %v553
        %v592 = vunpack.c.l.b16 %v554
        %v593 = vpack.c.b16 %v590, %v589
        %v594 = vpack.c.b16 %v592, %v591
        %v598 = vsel %vm369, %v344, 0
        %600 = vmatpush.bf16.msra.mxu0 0
        %601 = vmatpush.bf16.msra.mxu0 0
        %602 = vmatpush.bf16.msra.mxu0 0
        %603 = vmatpush.bf16.msra.mxu0 0
        %604 = vmatpush.bf16.msra.mxu0 0
        %605 = vmatpush.bf16.msra.mxu0 0
        %606 = vmatpush.bf16.msra.mxu0 %v594
        %607 = vmatpush.bf16.msra.mxu0 %v593
        %608 = vmatmul.bf16.gmra.mxu0 %v598
        %v609 = vpop.f32.mrf.mxu0
        %v610 = vadd.f32 %v582, %v609
        %v611 = vpop.f32.mrf.mxu0
        %612 = vdwg.mxu0
        %s613 = scalar_lea.vmem %s3, 32
        %v614 = vld [vmem:[%s613] sm:$0xf]
        %v615 = vld [vmem:[%s613 + $0x4] sm:$0xf]
        %v616 = vld [vmem:[%s613 + $0x8] sm:$0xf]
        %v617 = vld [vmem:[%s613 + $0xc] sm:$0xf]
        %v622 = vunpack.c.l.b16 %v614
        %v623 = vunpack.c.l.b16 %v615
        %v624 = vunpack.c.l.b16 %v616
        %v625 = vunpack.c.l.b16 %v617
        %v626 = vpack.c.b16 %v623, %v622
        %v627 = vpack.c.b16 %v625, %v624
        %630 = vmatpush.bf16.msra.mxu0 0
        %631 = vmatpush.bf16.msra.mxu0 0
        %632 = vmatpush.bf16.msra.mxu0 0
        %633 = vmatpush.bf16.msra.mxu0 0
        %634 = vmatpush.bf16.msra.mxu0 0
        %635 = vmatpush.bf16.msra.mxu0 0
        %636 = vmatpush.bf16.msra.mxu0 %v627
        %637 = vmatpush.bf16.msra.mxu0 %v626
        %638 = vmatmul.bf16.gmra.mxu0 %v371
        %v639 = vpop.f32.mrf.mxu0
        %v640 = vadd.f32 0.0, %v639
        %v641 = vpop.f32.mrf.mxu0
        %642 = vdwg.mxu0
        %v643 = vadd.f32 %v610, %v640
        %s644 = scalar_lea.vmem %s3, 48
        %v645 = vld [vmem:[%s644] sm:$0xf]
        %v646 = vld [vmem:[%s644 + $0x4] sm:$0xf]
        %v647 = vld [vmem:[%s644 + $0x8] sm:$0xf]
        %v648 = vld [vmem:[%s644 + $0xc] sm:$0xf]
        %v653 = vunpack.c.l.b16 %v645
        %v654 = vunpack.c.l.b16 %v646
        %v655 = vunpack.c.l.b16 %v647
        %v656 = vunpack.c.l.b16 %v648
        %v657 = vpack.c.b16 %v654, %v653
        %v658 = vpack.c.b16 %v656, %v655
        %661 = vmatpush.bf16.msra.mxu0 0
        %662 = vmatpush.bf16.msra.mxu0 0
        %663 = vmatpush.bf16.msra.mxu0 0
        %664 = vmatpush.bf16.msra.mxu0 0
        %665 = vmatpush.bf16.msra.mxu0 0
        %666 = vmatpush.bf16.msra.mxu0 0
        %667 = vmatpush.bf16.msra.mxu0 %v658
        %668 = vmatpush.bf16.msra.mxu0 %v657
        %669 = vmatmul.bf16.gmra.mxu0 %v503
        %v670 = vpop.f32.mrf.mxu0
        %v671 = vadd.f32 0.0, %v670
        %v672 = vpop.f32.mrf.mxu0
        %673 = vdwg.mxu0
        %v674 = vadd.f32 %v643, %v671
        %s675 = scalar_lea.vmem %s3, 64
        %v676 = vld [vmem:[%s675] sm:$0xf]
        %v677 = vld [vmem:[%s675 + $0x4] sm:$0xf]
        %v678 = vld [vmem:[%s675 + $0x8] sm:$0xf]
        %v679 = vld [vmem:[%s675 + $0xc] sm:$0xf]
        %v680 = vrot.slane %v355, 2
        %v685 = vunpack.c.l.b16 %v676
        %v686 = vunpack.c.l.b16 %v677
        %v687 = vunpack.c.l.b16 %v678
        %v688 = vunpack.c.l.b16 %v679
        %v689 = vpack.c.b16 %v686, %v685
        %v690 = vpack.c.b16 %v688, %v687
        %v694 = vsel %vm369, %v680, 0
        %696 = vmatpush.bf16.msra.mxu0 0
        %697 = vmatpush.bf16.msra.mxu0 0
        %698 = vmatpush.bf16.msra.mxu0 0
        %699 = vmatpush.bf16.msra.mxu0 0
        %700 = vmatpush.bf16.msra.mxu0 0
        %701 = vmatpush.bf16.msra.mxu0 0
        %702 = vmatpush.bf16.msra.mxu0 %v690
        %703 = vmatpush.bf16.msra.mxu0 %v689
        %704 = vmatmul.bf16.gmra.mxu0 %v694
        %v705 = vpop.f32.mrf.mxu0
        %v706 = vadd.f32 0.0, %v705
        %v707 = vpop.f32.mrf.mxu0
        %708 = vdwg.mxu0
        %v709 = vadd.f32 %v674, %v706
        %v710 = vperm.slane %v339, 2
        %v711 = vadd.f32 %v709, %v710
        %v712 = vtanh.pop %v711
        %v714 = vsel %vm387, %v712, 0
        %716 = vmatpush.msra.mxu0 0.0
        %717 = vmatpush.msra.mxu0 0.0
        %718 = vmatpush.msra.mxu0 0.0
        %719 = vmatpush.msra.mxu0 0.0
        %720 = vmatpush.msra.mxu0 0.0
        %721 = vmatpush.msra.mxu0 0.0
        %722 = vmatpush.msra.mxu0 0.0
        %723 = vmatpush.msra.mxu0 0.0
        %724 = vmatpush.msra.mxu0 0.0
        %725 = vmatpush.msra.mxu0 0.0
        %726 = vmatpush.msra.mxu0 0.0
        %727 = vmatpush.msra.mxu0 0.0
        %728 = vmatpush.msra.mxu0 0.0
        %729 = vmatpush.msra.mxu0 0.0
        %730 = vmatpush.msra.mxu0 0.0
        %731 = vmatpush.msra.mxu0 %v338
        %732 = vmatmul.f32.gmra.mxu0 %v714
        %v733 = vpop.f32.mrf.mxu0
        %v734 = vadd.f32 0.0, %v733
        %735 = vdwg.mxu0
        %737 = vrot.lane.b32.xlu0 %v734, 8
        %v738 = vpop.permute.xlu0 %737
        %vm740 = vcmask 97344
        %741 = vst.msk [vmem:[%s335] sm:$0xff] %vm740, %v738
        %s742 = sadd.s32 %s340, 2
        %s743 = smul.addr %s742, 4
        %s744 = scalar_lea.vmem %s309, %s743 [#allocation2]
        %v745 = vld [vmem:[%s744] sm:$0xf]
        %v746 = vld [vmem:[%s744 + $0x4] sm:$0x3]
        %v747 = vld [vmem:[%s1] sm:$0xf]
        %v748 = vld [vmem:[%s1 + $0x4] sm:$0xf]
        %v749 = vld [vmem:[%s1 + $0x8] sm:$0xf]
        %v750 = vld [vmem:[%s1 + $0xc] sm:$0xf]
        %v753 = vunpack.c.l.b16 %v745
        %v754 = vunpack.c.l.b16 %v746
        %v755 = vpack.c.b16 %v754, %v753
        %v756 = vrot.slane %v755, 1
        %v761 = vunpack.c.l.b16 %v747
        %v762 = vunpack.c.l.b16 %v748
        %v763 = vunpack.c.l.b16 %v749
        %v764 = vunpack.c.l.b16 %v750
        %v765 = vpack.c.b16 %v762, %v761
        %v766 = vpack.c.b16 %v764, %v763
        %v770 = vsel %vm369, %v756, 0
        %772 = vmatpush.bf16.msra.mxu0 0
        %773 = vmatpush.bf16.msra.mxu0 0
        %774 = vmatpush.bf16.msra.mxu0 0
        %775 = vmatpush.bf16.msra.mxu0 0
        %776 = vmatpush.bf16.msra.mxu0 0
        %777 = vmatpush.bf16.msra.mxu0 0
        %778 = vmatpush.bf16.msra.mxu0 %v766
        %779 = vmatpush.bf16.msra.mxu0 %v765
        %780 = vmatmul.bf16.gmra.mxu0 %v770
        %v781 = vpop.f32.mrf.mxu0
        %v782 = vadd.f32 %v350, %v781
        %v783 = vpop.f32.mrf.mxu0
        %784 = vdwg.mxu0
        %v785 = vtanh.pop %v782
        %v787 = vsel %vm387, %v785, 0
        %789 = vmatpush.msra.mxu0 0.0
        %790 = vmatpush.msra.mxu0 0.0
        %791 = vmatpush.msra.mxu0 0.0
        %792 = vmatpush.msra.mxu0 0.0
        %793 = vmatpush.msra.mxu0 0.0
        %794 = vmatpush.msra.mxu0 0.0
        %795 = vmatpush.msra.mxu0 0.0
        %796 = vmatpush.msra.mxu0 0.0
        %797 = vmatpush.msra.mxu0 0.0
        %798 = vmatpush.msra.mxu0 0.0
        %799 = vmatpush.msra.mxu0 0.0
        %800 = vmatpush.msra.mxu0 0.0
        %801 = vmatpush.msra.mxu0 0.0
        %802 = vmatpush.msra.mxu0 0.0
        %803 = vmatpush.msra.mxu0 0.0
        %804 = vmatpush.msra.mxu0 %v338
        %805 = vmatmul.f32.gmra.mxu0 %v787
        %v806 = vpop.f32.mrf.mxu0
        %v807 = vadd.f32 0.0, %v806
        %808 = vdwg.mxu0
        %810 = vrot.lane.b32.xlu0 %v807, 12
        %v811 = vpop.permute.xlu0 %810
        %vm813 = vcmask 130144
        %814 = vst.msk [vmem:[%s335] sm:$0xff] %vm813, %v811
        %v815 = vld [vmem:[%s2] sm:$0xf]
        %v816 = vld [vmem:[%s2 + $0x4] sm:$0xf]
        %v817 = vld [vmem:[%s2 + $0x8] sm:$0xf]
        %v818 = vld [vmem:[%s2 + $0xc] sm:$0xf]
        %v819 = vld [vmem:[%s417] sm:$0xf]
        %v820 = vld [vmem:[%s417 + $0x4] sm:$0xf]
        %v821 = vld [vmem:[%s417 + $0x8] sm:$0xf]
        %v822 = vld [vmem:[%s417 + $0xc] sm:$0xf]
        %v827 = vunpack.c.l.b16 %v819
        %v828 = vunpack.c.l.b16 %v820
        %v829 = vunpack.c.l.b16 %v821
        %v830 = vunpack.c.l.b16 %v822
        %v831 = vpack.c.b16 %v828, %v827
        %v832 = vpack.c.b16 %v830, %v829
        %835 = vmatpush.bf16.msra.mxu0 0
        %836 = vmatpush.bf16.msra.mxu0 0
        %837 = vmatpush.bf16.msra.mxu0 0
        %838 = vmatpush.bf16.msra.mxu0 0
        %839 = vmatpush.bf16.msra.mxu0 0
        %840 = vmatpush.bf16.msra.mxu0 0
        %841 = vmatpush.bf16.msra.mxu0 %v832
        %842 = vmatpush.bf16.msra.mxu0 %v831
        %843 = vmatmul.bf16.gmra.mxu0 %v770
        %v844 = vpop.f32.mrf.mxu0
        %v845 = vadd.f32 0.0, %v844
        %v846 = vpop.f32.mrf.mxu0
        %847 = vdwg.mxu0
        %v849 = vshrl.u32 %v755, 16
        %v851 = vshll.u32 %v755, 16
        %v853 = vrot.slane %v851, 1
        %v854 = vor.u32 %v849, %v853
        %v859 = vunpack.c.l.b16 %v815
        %v860 = vunpack.c.l.b16 %v816
        %v861 = vunpack.c.l.b16 %v817
        %v862 = vunpack.c.l.b16 %v818
        %v863 = vpack.c.b16 %v860, %v859
        %v864 = vpack.c.b16 %v862, %v861
        %v868 = vsel %vm369, %v854, 0
        %870 = vmatpush.bf16.msra.mxu0 0
        %871 = vmatpush.bf16.msra.mxu0 0
        %872 = vmatpush.bf16.msra.mxu0 0
        %873 = vmatpush.bf16.msra.mxu0 0
        %874 = vmatpush.bf16.msra.mxu0 0
        %875 = vmatpush.bf16.msra.mxu0 0
        %876 = vmatpush.bf16.msra.mxu0 %v864
        %877 = vmatpush.bf16.msra.mxu0 %v863
        %878 = vmatmul.bf16.gmra.mxu0 %v868
        %v879 = vpop.f32.mrf.mxu0
        %v880 = vadd.f32 %v845, %v879
        %v881 = vpop.f32.mrf.mxu0
        %882 = vdwg.mxu0
        %v883 = vld [vmem:[%s482] sm:$0xf]
        %v884 = vld [vmem:[%s482 + $0x4] sm:$0xf]
        %v885 = vld [vmem:[%s482 + $0x8] sm:$0xf]
        %v886 = vld [vmem:[%s482 + $0xc] sm:$0xf]
        %v887 = vrot.slane %v849, 1
        %v888 = vrot.slane %v851, 2
        %v889 = vor.u32 %v887, %v888
        %v894 = vunpack.c.l.b16 %v883
        %v895 = vunpack.c.l.b16 %v884
        %v896 = vunpack.c.l.b16 %v885
        %v897 = vunpack.c.l.b16 %v886
        %v898 = vpack.c.b16 %v895, %v894
        %v899 = vpack.c.b16 %v897, %v896
        %v903 = vsel %vm369, %v889, 0
        %905 = vmatpush.bf16.msra.mxu0 0
        %906 = vmatpush.bf16.msra.mxu0 0
        %907 = vmatpush.bf16.msra.mxu0 0
        %908 = vmatpush.bf16.msra.mxu0 0
        %909 = vmatpush.bf16.msra.mxu0 0
        %910 = vmatpush.bf16.msra.mxu0 0
        %911 = vmatpush.bf16.msra.mxu0 %v899
        %912 = vmatpush.bf16.msra.mxu0 %v898
        %913 = vmatmul.bf16.gmra.mxu0 %v903
        %v914 = vpop.f32.mrf.mxu0
        %v915 = vadd.f32 0.0, %v914
        %v916 = vpop.f32.mrf.mxu0
        %917 = vdwg.mxu0
        %v918 = vadd.f32 %v880, %v915
        %v919 = vadd.f32 %v918, %v519
        %v920 = vtanh.pop %v919
        %v922 = vsel %vm387, %v920, 0
        %924 = vmatpush.msra.mxu0 0.0
        %925 = vmatpush.msra.mxu0 0.0
        %926 = vmatpush.msra.mxu0 0.0
        %927 = vmatpush.msra.mxu0 0.0
        %928 = vmatpush.msra.mxu0 0.0
        %929 = vmatpush.msra.mxu0 0.0
        %930 = vmatpush.msra.mxu0 0.0
        %931 = vmatpush.msra.mxu0 0.0
        %932 = vmatpush.msra.mxu0 0.0
        %933 = vmatpush.msra.mxu0 0.0
        %934 = vmatpush.msra.mxu0 0.0
        %935 = vmatpush.msra.mxu0 0.0
        %936 = vmatpush.msra.mxu0 0.0
        %937 = vmatpush.msra.mxu0 0.0
        %938 = vmatpush.msra.mxu0 0.0
        %939 = vmatpush.msra.mxu0 %v338
        %940 = vmatmul.f32.gmra.mxu0 %v922
        %v941 = vpop.f32.mrf.mxu0
        %v942 = vadd.f32 0.0, %v941
        %943 = vdwg.mxu0
        %945 = vrot.lane.b32.xlu0 %v942, 16
        %v946 = vpop.permute.xlu0 %945
        %vm948 = vcmask 162944
        %949 = vst.msk [vmem:[%s335] sm:$0xff] %vm948, %v946
        %v950 = vld [vmem:[%s3] sm:$0xf]
        %v951 = vld [vmem:[%s3 + $0x4] sm:$0xf]
        %v952 = vld [vmem:[%s3 + $0x8] sm:$0xf]
        %v953 = vld [vmem:[%s3 + $0xc] sm:$0xf]
        %v954 = vld [vmem:[%s555] sm:$0xf]
        %v955 = vld [vmem:[%s555 + $0x4] sm:$0xf]
        %v956 = vld [vmem:[%s555 + $0x8] sm:$0xf]
        %v957 = vld [vmem:[%s555 + $0xc] sm:$0xf]
        %v962 = vunpack.c.l.b16 %v954
        %v963 = vunpack.c.l.b16 %v955
        %v964 = vunpack.c.l.b16 %v956
        %v965 = vunpack.c.l.b16 %v957
        %v966 = vpack.c.b16 %v963, %v962
        %v967 = vpack.c.b16 %v965, %v964
        %970 = vmatpush.bf16.msra.mxu0 0
        %971 = vmatpush.bf16.msra.mxu0 0
        %972 = vmatpush.bf16.msra.mxu0 0
        %973 = vmatpush.bf16.msra.mxu0 0
        %974 = vmatpush.bf16.msra.mxu0 0
        %975 = vmatpush.bf16.msra.mxu0 0
        %976 = vmatpush.bf16.msra.mxu0 %v967
        %977 = vmatpush.bf16.msra.mxu0 %v966
        %978 = vmatmul.bf16.gmra.mxu0 %v868
        %v979 = vpop.f32.mrf.mxu0
        %v980 = vadd.f32 0.0, %v979
        %v981 = vpop.f32.mrf.mxu0
        %982 = vdwg.mxu0
        %v987 = vunpack.c.l.b16 %v950
        %v988 = vunpack.c.l.b16 %v951
        %v989 = vunpack.c.l.b16 %v952
        %v990 = vunpack.c.l.b16 %v953
        %v991 = vpack.c.b16 %v988, %v987
        %v992 = vpack.c.b16 %v990, %v989
        %v996 = vsel %vm369, %v745, 0
        %998 = vmatpush.bf16.msra.mxu0 0
        %999 = vmatpush.bf16.msra.mxu0 0
        %1000 = vmatpush.bf16.msra.mxu0 0
        %1001 = vmatpush.bf16.msra.mxu0 0
        %1002 = vmatpush.bf16.msra.mxu0 0
        %1003 = vmatpush.bf16.msra.mxu0 0
        %1004 = vmatpush.bf16.msra.mxu0 %v992
        %1005 = vmatpush.bf16.msra.mxu0 %v991
        %1006 = vmatmul.bf16.gmra.mxu0 %v996
        %v1007 = vpop.f32.mrf.mxu0
        %v1008 = vadd.f32 %v980, %v1007
        %v1009 = vpop.f32.mrf.mxu0
        %1010 = vdwg.mxu0
        %v1011 = vld [vmem:[%s613] sm:$0xf]
        %v1012 = vld [vmem:[%s613 + $0x4] sm:$0xf]
        %v1013 = vld [vmem:[%s613 + $0x8] sm:$0xf]
        %v1014 = vld [vmem:[%s613 + $0xc] sm:$0xf]
        %v1019 = vunpack.c.l.b16 %v1011
        %v1020 = vunpack.c.l.b16 %v1012
        %v1021 = vunpack.c.l.b16 %v1013
        %v1022 = vunpack.c.l.b16 %v1014
        %v1023 = vpack.c.b16 %v1020, %v1019
        %v1024 = vpack.c.b16 %v1022, %v1021
        %1027 = vmatpush.bf16.msra.mxu0 0
        %1028 = vmatpush.bf16.msra.mxu0 0
        %1029 = vmatpush.bf16.msra.mxu0 0
        %1030 = vmatpush.bf16.msra.mxu0 0
        %1031 = vmatpush.bf16.msra.mxu0 0
        %1032 = vmatpush.bf16.msra.mxu0 0
        %1033 = vmatpush.bf16.msra.mxu0 %v1024
        %1034 = vmatpush.bf16.msra.mxu0 %v1023
        %1035 = vmatmul.bf16.gmra.mxu0 %v770
        %v1036 = vpop.f32.mrf.mxu0
        %v1037 = vadd.f32 0.0, %v1036
        %v1038 = vpop.f32.mrf.mxu0
        %1039 = vdwg.mxu0
        %v1040 = vadd.f32 %v1008, %v1037
        %v1041 = vld [vmem:[%s644] sm:$0xf]
        %v1042 = vld [vmem:[%s644 + $0x4] sm:$0xf]
        %v1043 = vld [vmem:[%s644 + $0x8] sm:$0xf]
        %v1044 = vld [vmem:[%s644 + $0xc] sm:$0xf]
        %v1049 = vunpack.c.l.b16 %v1041
        %v1050 = vunpack.c.l.b16 %v1042
        %v1051 = vunpack.c.l.b16 %v1043
        %v1052 = vunpack.c.l.b16 %v1044
        %v1053 = vpack.c.b16 %v1050, %v1049
        %v1054 = vpack.c.b16 %v1052, %v1051
        %1057 = vmatpush.bf16.msra.mxu0 0
        %1058 = vmatpush.bf16.msra.mxu0 0
        %1059 = vmatpush.bf16.msra.mxu0 0
        %1060 = vmatpush.bf16.msra.mxu0 0
        %1061 = vmatpush.bf16.msra.mxu0 0
        %1062 = vmatpush.bf16.msra.mxu0 0
        %1063 = vmatpush.bf16.msra.mxu0 %v1054
        %1064 = vmatpush.bf16.msra.mxu0 %v1053
        %1065 = vmatmul.bf16.gmra.mxu0 %v903
        %v1066 = vpop.f32.mrf.mxu0
        %v1067 = vadd.f32 0.0, %v1066
        %v1068 = vpop.f32.mrf.mxu0
        %1069 = vdwg.mxu0
        %v1070 = vadd.f32 %v1040, %v1067
        %v1071 = vld [vmem:[%s675] sm:$0xf]
        %v1072 = vld [vmem:[%s675 + $0x4] sm:$0xf]
        %v1073 = vld [vmem:[%s675 + $0x8] sm:$0xf]
        %v1074 = vld [vmem:[%s675 + $0xc] sm:$0xf]
        %v1075 = vrot.slane %v755, 2
        %v1080 = vunpack.c.l.b16 %v1071
        %v1081 = vunpack.c.l.b16 %v1072
        %v1082 = vunpack.c.l.b16 %v1073
        %v1083 = vunpack.c.l.b16 %v1074
        %v1084 = vpack.c.b16 %v1081, %v1080
        %v1085 = vpack.c.b16 %v1083, %v1082
        %v1089 = vsel %vm369, %v1075, 0
        %1091 = vmatpush.bf16.msra.mxu0 0
        %1092 = vmatpush.bf16.msra.mxu0 0
        %1093 = vmatpush.bf16.msra.mxu0 0
        %1094 = vmatpush.bf16.msra.mxu0 0
        %1095 = vmatpush.bf16.msra.mxu0 0
        %1096 = vmatpush.bf16.msra.mxu0 0
        %1097 = vmatpush.bf16.msra.mxu0 %v1085
        %1098 = vmatpush.bf16.msra.mxu0 %v1084
        %1099 = vmatmul.bf16.gmra.mxu0 %v1089
        %v1100 = vpop.f32.mrf.mxu0
        %v1101 = vadd.f32 0.0, %v1100
        %v1102 = vpop.f32.mrf.mxu0
        %1103 = vdwg.mxu0
        %v1104 = vadd.f32 %v1070, %v1101
        %v1105 = vadd.f32 %v1104, %v710
        %v1106 = vtanh.pop %v1105
        %v1108 = vsel %vm387, %v1106, 0
        %1110 = vmatpush.msra.mxu0 0.0
        %1111 = vmatpush.msra.mxu0 0.0
        %1112 = vmatpush.msra.mxu0 0.0
        %1113 = vmatpush.msra.mxu0 0.0
        %1114 = vmatpush.msra.mxu0 0.0
        %1115 = vmatpush.msra.mxu0 0.0
        %1116 = vmatpush.msra.mxu0 0.0
        %1117 = vmatpush.msra.mxu0 0.0
        %1118 = vmatpush.msra.mxu0 0.0
        %1119 = vmatpush.msra.mxu0 0.0
        %1120 = vmatpush.msra.mxu0 0.0
        %1121 = vmatpush.msra.mxu0 0.0
        %1122 = vmatpush.msra.mxu0 0.0
        %1123 = vmatpush.msra.mxu0 0.0
        %1124 = vmatpush.msra.mxu0 0.0
        %1125 = vmatpush.msra.mxu0 %v338
        %1126 = vmatmul.f32.gmra.mxu0 %v1108
        %v1127 = vpop.f32.mrf.mxu0
        %v1128 = vadd.f32 0.0, %v1127
        %1129 = vdwg.mxu0
        %1131 = vrot.lane.b32.xlu0 %v1128, 20
        %v1132 = vpop.permute.xlu0 %1131
        %vm1134 = vcmask 195744
        %1135 = vst.msk [vmem:[%s335] sm:$0xff] %vm1134, %v1132
        %s1136 = sadd.s32 %s340, 4
        %s1137 = smul.addr %s1136, 4
        %s1138 = scalar_lea.vmem %s309, %s1137 [#allocation2]
        %v1139 = vld [vmem:[%s1138] sm:$0xf]
        %v1140 = vld [vmem:[%s1138 + $0x4] sm:$0x3]
        %v1141 = vld [vmem:[%s1] sm:$0xf]
        %v1142 = vld [vmem:[%s1 + $0x4] sm:$0xf]
        %v1143 = vld [vmem:[%s1 + $0x8] sm:$0xf]
        %v1144 = vld [vmem:[%s1 + $0xc] sm:$0xf]
        %v1147 = vunpack.c.l.b16 %v1139
        %v1148 = vunpack.c.l.b16 %v1140
        %v1149 = vpack.c.b16 %v1148, %v1147
        %v1150 = vrot.slane %v1149, 1
        %v1155 = vunpack.c.l.b16 %v1141
        %v1156 = vunpack.c.l.b16 %v1142
        %v1157 = vunpack.c.l.b16 %v1143
        %v1158 = vunpack.c.l.b16 %v1144
        %v1159 = vpack.c.b16 %v1156, %v1155
        %v1160 = vpack.c.b16 %v1158, %v1157
        %v1164 = vsel %vm369, %v1150, 0
        %1166 = vmatpush.bf16.msra.mxu0 0
        %1167 = vmatpush.bf16.msra.mxu0 0
        %1168 = vmatpush.bf16.msra.mxu0 0
        %1169 = vmatpush.bf16.msra.mxu0 0
        %1170 = vmatpush.bf16.msra.mxu0 0
        %1171 = vmatpush.bf16.msra.mxu0 0
        %1172 = vmatpush.bf16.msra.mxu0 %v1160
        %1173 = vmatpush.bf16.msra.mxu0 %v1159
        %1174 = vmatmul.bf16.gmra.mxu0 %v1164
        %v1175 = vpop.f32.mrf.mxu0
        %v1176 = vadd.f32 %v350, %v1175
        %v1177 = vpop.f32.mrf.mxu0
        %1178 = vdwg.mxu0
        %v1179 = vtanh.pop %v1176
        %v1181 = vsel %vm387, %v1179, 0
        %1183 = vmatpush.msra.mxu0 0.0
        %1184 = vmatpush.msra.mxu0 0.0
        %1185 = vmatpush.msra.mxu0 0.0
        %1186 = vmatpush.msra.mxu0 0.0
        %1187 = vmatpush.msra.mxu0 0.0
        %1188 = vmatpush.msra.mxu0 0.0
        %1189 = vmatpush.msra.mxu0 0.0
        %1190 = vmatpush.msra.mxu0 0.0
        %1191 = vmatpush.msra.mxu0 0.0
        %1192 = vmatpush.msra.mxu0 0.0
        %1193 = vmatpush.msra.mxu0 0.0
        %1194 = vmatpush.msra.mxu0 0.0
        %1195 = vmatpush.msra.mxu0 0.0
        %1196 = vmatpush.msra.mxu0 0.0
        %1197 = vmatpush.msra.mxu0 0.0
        %1198 = vmatpush.msra.mxu0 %v338
        %1199 = vmatmul.f32.gmra.mxu0 %v1181
        %v1200 = vpop.f32.mrf.mxu0
        %v1201 = vadd.f32 0.0, %v1200
        %1202 = vdwg.mxu0
        %1204 = vrot.lane.b32.xlu0 %v1201, 24
        %v1205 = vpop.permute.xlu0 %1204
        %vm1207 = vcmask 228544
        %1208 = vst.msk [vmem:[%s335] sm:$0xff] %vm1207, %v1205
        %v1209 = vld [vmem:[%s2] sm:$0xf]
        %v1210 = vld [vmem:[%s2 + $0x4] sm:$0xf]
        %v1211 = vld [vmem:[%s2 + $0x8] sm:$0xf]
        %v1212 = vld [vmem:[%s2 + $0xc] sm:$0xf]
        %v1213 = vld [vmem:[%s417] sm:$0xf]
        %v1214 = vld [vmem:[%s417 + $0x4] sm:$0xf]
        %v1215 = vld [vmem:[%s417 + $0x8] sm:$0xf]
        %v1216 = vld [vmem:[%s417 + $0xc] sm:$0xf]
        %v1221 = vunpack.c.l.b16 %v1213
        %v1222 = vunpack.c.l.b16 %v1214
        %v1223 = vunpack.c.l.b16 %v1215
        %v1224 = vunpack.c.l.b16 %v1216
        %v1225 = vpack.c.b16 %v1222, %v1221
        %v1226 = vpack.c.b16 %v1224, %v1223
        %1229 = vmatpush.bf16.msra.mxu0 0
        %1230 = vmatpush.bf16.msra.mxu0 0
        %1231 = vmatpush.bf16.msra.mxu0 0
        %1232 = vmatpush.bf16.msra.mxu0 0
        %1233 = vmatpush.bf16.msra.mxu0 0
        %1234 = vmatpush.bf16.msra.mxu0 0
        %1235 = vmatpush.bf16.msra.mxu0 %v1226
        %1236 = vmatpush.bf16.msra.mxu0 %v1225
        %1237 = vmatmul.bf16.gmra.mxu0 %v1164
        %v1238 = vpop.f32.mrf.mxu0
        %v1239 = vadd.f32 0.0, %v1238
        %v1240 = vpop.f32.mrf.mxu0
        %1241 = vdwg.mxu0
        %v1243 = vshrl.u32 %v1149, 16
        %v1245 = vshll.u32 %v1149, 16
        %v1247 = vrot.slane %v1245, 1
        %v1248 = vor.u32 %v1243, %v1247
        %v1253 = vunpack.c.l.b16 %v1209
        %v1254 = vunpack.c.l.b16 %v1210
        %v1255 = vunpack.c.l.b16 %v1211
        %v1256 = vunpack.c.l.b16 %v1212
        %v1257 = vpack.c.b16 %v1254, %v1253
        %v1258 = vpack.c.b16 %v1256, %v1255
        %v1262 = vsel %vm369, %v1248, 0
        %1264 = vmatpush.bf16.msra.mxu0 0
        %1265 = vmatpush.bf16.msra.mxu0 0
        %1266 = vmatpush.bf16.msra.mxu0 0
        %1267 = vmatpush.bf16.msra.mxu0 0
        %1268 = vmatpush.bf16.msra.mxu0 0
        %1269 = vmatpush.bf16.msra.mxu0 0
        %1270 = vmatpush.bf16.msra.mxu0 %v1258
        %1271 = vmatpush.bf16.msra.mxu0 %v1257
        %1272 = vmatmul.bf16.gmra.mxu0 %v1262
        %v1273 = vpop.f32.mrf.mxu0
        %v1274 = vadd.f32 %v1239, %v1273
        %v1275 = vpop.f32.mrf.mxu0
        %1276 = vdwg.mxu0
        %v1277 = vld [vmem:[%s482] sm:$0xf]
        %v1278 = vld [vmem:[%s482 + $0x4] sm:$0xf]
        %v1279 = vld [vmem:[%s482 + $0x8] sm:$0xf]
        %v1280 = vld [vmem:[%s482 + $0xc] sm:$0xf]
        %v1281 = vrot.slane %v1243, 1
        %v1282 = vrot.slane %v1245, 2
        %v1283 = vor.u32 %v1281, %v1282
        %v1288 = vunpack.c.l.b16 %v1277
        %v1289 = vunpack.c.l.b16 %v1278
        %v1290 = vunpack.c.l.b16 %v1279
        %v1291 = vunpack.c.l.b16 %v1280
        %v1292 = vpack.c.b16 %v1289, %v1288
        %v1293 = vpack.c.b16 %v1291, %v1290
        %v1297 = vsel %vm369, %v1283, 0
        %1299 = vmatpush.bf16.msra.mxu0 0
        %1300 = vmatpush.bf16.msra.mxu0 0
        %1301 = vmatpush.bf16.msra.mxu0 0
        %1302 = vmatpush.bf16.msra.mxu0 0
        %1303 = vmatpush.bf16.msra.mxu0 0
        %1304 = vmatpush.bf16.msra.mxu0 0
        %1305 = vmatpush.bf16.msra.mxu0 %v1293
        %1306 = vmatpush.bf16.msra.mxu0 %v1292
        %1307 = vmatmul.bf16.gmra.mxu0 %v1297
        %v1308 = vpop.f32.mrf.mxu0
        %v1309 = vadd.f32 0.0, %v1308
        %v1310 = vpop.f32.mrf.mxu0
        %1311 = vdwg.mxu0
        %v1312 = vadd.f32 %v1274, %v1309
        %v1313 = vadd.f32 %v1312, %v519
        %v1314 = vtanh.pop %v1313
        %v1316 = vsel %vm387, %v1314, 0
        %1318 = vmatpush.msra.mxu0 0.0
        %1319 = vmatpush.msra.mxu0 0.0
        %1320 = vmatpush.msra.mxu0 0.0
        %1321 = vmatpush.msra.mxu0 0.0
        %1322 = vmatpush.msra.mxu0 0.0
        %1323 = vmatpush.msra.mxu0 0.0
        %1324 = vmatpush.msra.mxu0 0.0
        %1325 = vmatpush.msra.mxu0 0.0
        %1326 = vmatpush.msra.mxu0 0.0
        %1327 = vmatpush.msra.mxu0 0.0
        %1328 = vmatpush.msra.mxu0 0.0
        %1329 = vmatpush.msra.mxu0 0.0
        %1330 = vmatpush.msra.mxu0 0.0
        %1331 = vmatpush.msra.mxu0 0.0
        %1332 = vmatpush.msra.mxu0 0.0
        %1333 = vmatpush.msra.mxu0 %v338
        %1334 = vmatmul.f32.gmra.mxu0 %v1316
        %v1335 = vpop.f32.mrf.mxu0
        %v1336 = vadd.f32 0.0, %v1335
        %1337 = vdwg.mxu0
        %1339 = vrot.lane.b32.xlu0 %v1336, 28
        %v1340 = vpop.permute.xlu0 %1339
        %vm1342 = vcmask 261344
        %1343 = vst.msk [vmem:[%s335] sm:$0xff] %vm1342, %v1340
        %v1344 = vld [vmem:[%s3] sm:$0xf]
        %v1345 = vld [vmem:[%s3 + $0x4] sm:$0xf]
        %v1346 = vld [vmem:[%s3 + $0x8] sm:$0xf]
        %v1347 = vld [vmem:[%s3 + $0xc] sm:$0xf]
        %v1348 = vld [vmem:[%s555] sm:$0xf]
        %v1349 = vld [vmem:[%s555 + $0x4] sm:$0xf]
        %v1350 = vld [vmem:[%s555 + $0x8] sm:$0xf]
        %v1351 = vld [vmem:[%s555 + $0xc] sm:$0xf]
        %v1356 = vunpack.c.l.b16 %v1348
        %v1357 = vunpack.c.l.b16 %v1349
        %v1358 = vunpack.c.l.b16 %v1350
        %v1359 = vunpack.c.l.b16 %v1351
        %v1360 = vpack.c.b16 %v1357, %v1356
        %v1361 = vpack.c.b16 %v1359, %v1358
        %1364 = vmatpush.bf16.msra.mxu0 0
        %1365 = vmatpush.bf16.msra.mxu0 0
        %1366 = vmatpush.bf16.msra.mxu0 0
        %1367 = vmatpush.bf16.msra.mxu0 0
        %1368 = vmatpush.bf16.msra.mxu0 0
        %1369 = vmatpush.bf16.msra.mxu0 0
        %1370 = vmatpush.bf16.msra.mxu0 %v1361
        %1371 = vmatpush.bf16.msra.mxu0 %v1360
        %1372 = vmatmul.bf16.gmra.mxu0 %v1262
        %v1373 = vpop.f32.mrf.mxu0
        %v1374 = vadd.f32 0.0, %v1373
        %v1375 = vpop.f32.mrf.mxu0
        %1376 = vdwg.mxu0
        %v1381 = vunpack.c.l.b16 %v1344
        %v1382 = vunpack.c.l.b16 %v1345
        %v1383 = vunpack.c.l.b16 %v1346
        %v1384 = vunpack.c.l.b16 %v1347
        %v1385 = vpack.c.b16 %v1382, %v1381
        %v1386 = vpack.c.b16 %v1384, %v1383
        %v1390 = vsel %vm369, %v1139, 0
        %1392 = vmatpush.bf16.msra.mxu0 0
        %1393 = vmatpush.bf16.msra.mxu0 0
        %1394 = vmatpush.bf16.msra.mxu0 0
        %1395 = vmatpush.bf16.msra.mxu0 0
        %1396 = vmatpush.bf16.msra.mxu0 0
        %1397 = vmatpush.bf16.msra.mxu0 0
        %1398 = vmatpush.bf16.msra.mxu0 %v1386
        %1399 = vmatpush.bf16.msra.mxu0 %v1385
        %1400 = vmatmul.bf16.gmra.mxu0 %v1390
        %v1401 = vpop.f32.mrf.mxu0
        %v1402 = vadd.f32 %v1374, %v1401
        %v1403 = vpop.f32.mrf.mxu0
        %1404 = vdwg.mxu0
        %v1405 = vld [vmem:[%s613] sm:$0xf]
        %v1406 = vld [vmem:[%s613 + $0x4] sm:$0xf]
        %v1407 = vld [vmem:[%s613 + $0x8] sm:$0xf]
        %v1408 = vld [vmem:[%s613 + $0xc] sm:$0xf]
        %v1413 = vunpack.c.l.b16 %v1405
        %v1414 = vunpack.c.l.b16 %v1406
        %v1415 = vunpack.c.l.b16 %v1407
        %v1416 = vunpack.c.l.b16 %v1408
        %v1417 = vpack.c.b16 %v1414, %v1413
        %v1418 = vpack.c.b16 %v1416, %v1415
        %1421 = vmatpush.bf16.msra.mxu0 0
        %1422 = vmatpush.bf16.msra.mxu0 0
        %1423 = vmatpush.bf16.msra.mxu0 0
        %1424 = vmatpush.bf16.msra.mxu0 0
        %1425 = vmatpush.bf16.msra.mxu0 0
        %1426 = vmatpush.bf16.msra.mxu0 0
        %1427 = vmatpush.bf16.msra.mxu0 %v1418
        %1428 = vmatpush.bf16.msra.mxu0 %v1417
        %1429 = vmatmul.bf16.gmra.mxu0 %v1164
        %v1430 = vpop.f32.mrf.mxu0
        %v1431 = vadd.f32 0.0, %v1430
        %v1432 = vpop.f32.mrf.mxu0
        %1433 = vdwg.mxu0
        %v1434 = vadd.f32 %v1402, %v1431
        %v1435 = vld [vmem:[%s644] sm:$0xf]
        %v1436 = vld [vmem:[%s644 + $0x4] sm:$0xf]
        %v1437 = vld [vmem:[%s644 + $0x8] sm:$0xf]
        %v1438 = vld [vmem:[%s644 + $0xc] sm:$0xf]
        %v1443 = vunpack.c.l.b16 %v1435
        %v1444 = vunpack.c.l.b16 %v1436
        %v1445 = vunpack.c.l.b16 %v1437
        %v1446 = vunpack.c.l.b16 %v1438
        %v1447 = vpack.c.b16 %v1444, %v1443
        %v1448 = vpack.c.b16 %v1446, %v1445
        %1451 = vmatpush.bf16.msra.mxu0 0
        %1452 = vmatpush.bf16.msra.mxu0 0
        %1453 = vmatpush.bf16.msra.mxu0 0
        %1454 = vmatpush.bf16.msra.mxu0 0
        %1455 = vmatpush.bf16.msra.mxu0 0
        %1456 = vmatpush.bf16.msra.mxu0 0
        %1457 = vmatpush.bf16.msra.mxu0 %v1448
        %1458 = vmatpush.bf16.msra.mxu0 %v1447
        %1459 = vmatmul.bf16.gmra.mxu0 %v1297
        %v1460 = vpop.f32.mrf.mxu0
        %v1461 = vadd.f32 0.0, %v1460
        %v1462 = vpop.f32.mrf.mxu0
        %1463 = vdwg.mxu0
        %v1464 = vadd.f32 %v1434, %v1461
        %v1465 = vld [vmem:[%s675] sm:$0xf]
        %v1466 = vld [vmem:[%s675 + $0x4] sm:$0xf]
        %v1467 = vld [vmem:[%s675 + $0x8] sm:$0xf]
        %v1468 = vld [vmem:[%s675 + $0xc] sm:$0xf]
        %v1469 = vrot.slane %v1149, 2
        %v1474 = vunpack.c.l.b16 %v1465
        %v1475 = vunpack.c.l.b16 %v1466
        %v1476 = vunpack.c.l.b16 %v1467
        %v1477 = vunpack.c.l.b16 %v1468
        %v1478 = vpack.c.b16 %v1475, %v1474
        %v1479 = vpack.c.b16 %v1477, %v1476
        %v1483 = vsel %vm369, %v1469, 0
        %1485 = vmatpush.bf16.msra.mxu0 0
        %1486 = vmatpush.bf16.msra.mxu0 0
        %1487 = vmatpush.bf16.msra.mxu0 0
        %1488 = vmatpush.bf16.msra.mxu0 0
        %1489 = vmatpush.bf16.msra.mxu0 0
        %1490 = vmatpush.bf16.msra.mxu0 0
        %1491 = vmatpush.bf16.msra.mxu0 %v1479
        %1492 = vmatpush.bf16.msra.mxu0 %v1478
        %1493 = vmatmul.bf16.gmra.mxu0 %v1483
        %v1494 = vpop.f32.mrf.mxu0
        %v1495 = vadd.f32 0.0, %v1494
        %v1496 = vpop.f32.mrf.mxu0
        %1497 = vdwg.mxu0
        %v1498 = vadd.f32 %v1464, %v1495
        %v1499 = vadd.f32 %v1498, %v710
        %v1500 = vtanh.pop %v1499
        %v1502 = vsel %vm387, %v1500, 0
        %1504 = vmatpush.msra.mxu0 0.0
        %1505 = vmatpush.msra.mxu0 0.0
        %1506 = vmatpush.msra.mxu0 0.0
        %1507 = vmatpush.msra.mxu0 0.0
        %1508 = vmatpush.msra.mxu0 0.0
        %1509 = vmatpush.msra.mxu0 0.0
        %1510 = vmatpush.msra.mxu0 0.0
        %1511 = vmatpush.msra.mxu0 0.0
        %1512 = vmatpush.msra.mxu0 0.0
        %1513 = vmatpush.msra.mxu0 0.0
        %1514 = vmatpush.msra.mxu0 0.0
        %1515 = vmatpush.msra.mxu0 0.0
        %1516 = vmatpush.msra.mxu0 0.0
        %1517 = vmatpush.msra.mxu0 0.0
        %1518 = vmatpush.msra.mxu0 0.0
        %1519 = vmatpush.msra.mxu0 %v338
        %1520 = vmatmul.f32.gmra.mxu0 %v1502
        %v1521 = vpop.f32.mrf.mxu0
        %v1522 = vadd.f32 0.0, %v1521
        %1523 = vdwg.mxu0
        %1525 = vrot.lane.b32.xlu0 %v1522, 32
        %v1526 = vpop.permute.xlu0 %1525
        %vm1528 = vcmask 294144
        %1529 = vst.msk [vmem:[%s335] sm:$0xff] %vm1528, %v1526
        %s1530 = sadd.s32 %s340, 6
        %s1531 = smul.addr %s1530, 4
        %s1532 = scalar_lea.vmem %s309, %s1531 [#allocation2]
        %v1533 = vld [vmem:[%s1532] sm:$0xf]
        %v1534 = vld [vmem:[%s1532 + $0x4] sm:$0x3]
        %v1535 = vld [vmem:[%s1] sm:$0xf]
        %v1536 = vld [vmem:[%s1 + $0x4] sm:$0xf]
        %v1537 = vld [vmem:[%s1 + $0x8] sm:$0xf]
        %v1538 = vld [vmem:[%s1 + $0xc] sm:$0xf]
        %v1541 = vunpack.c.l.b16 %v1533
        %v1542 = vunpack.c.l.b16 %v1534
        %v1543 = vpack.c.b16 %v1542, %v1541
        %v1544 = vrot.slane %v1543, 1
        %v1549 = vunpack.c.l.b16 %v1535
        %v1550 = vunpack.c.l.b16 %v1536
        %v1551 = vunpack.c.l.b16 %v1537
        %v1552 = vunpack.c.l.b16 %v1538
        %v1553 = vpack.c.b16 %v1550, %v1549
        %v1554 = vpack.c.b16 %v1552, %v1551
        %v1558 = vsel %vm369, %v1544, 0
        %1560 = vmatpush.bf16.msra.mxu0 0
        %1561 = vmatpush.bf16.msra.mxu0 0
        %1562 = vmatpush.bf16.msra.mxu0 0
        %1563 = vmatpush.bf16.msra.mxu0 0
        %1564 = vmatpush.bf16.msra.mxu0 0
        %1565 = vmatpush.bf16.msra.mxu0 0
        %1566 = vmatpush.bf16.msra.mxu0 %v1554
        %1567 = vmatpush.bf16.msra.mxu0 %v1553
        %1568 = vmatmul.bf16.gmra.mxu0 %v1558
        %v1569 = vpop.f32.mrf.mxu0
        %v1570 = vadd.f32 %v350, %v1569
        %v1571 = vpop.f32.mrf.mxu0
        %1572 = vdwg.mxu0
        %v1573 = vtanh.pop %v1570
        %v1575 = vsel %vm387, %v1573, 0
        %1577 = vmatpush.msra.mxu0 0.0
        %1578 = vmatpush.msra.mxu0 0.0
        %1579 = vmatpush.msra.mxu0 0.0
        %1580 = vmatpush.msra.mxu0 0.0
        %1581 = vmatpush.msra.mxu0 0.0
        %1582 = vmatpush.msra.mxu0 0.0
        %1583 = vmatpush.msra.mxu0 0.0
        %1584 = vmatpush.msra.mxu0 0.0
        %1585 = vmatpush.msra.mxu0 0.0
        %1586 = vmatpush.msra.mxu0 0.0
        %1587 = vmatpush.msra.mxu0 0.0
        %1588 = vmatpush.msra.mxu0 0.0
        %1589 = vmatpush.msra.mxu0 0.0
        %1590 = vmatpush.msra.mxu0 0.0
        %1591 = vmatpush.msra.mxu0 0.0
        %1592 = vmatpush.msra.mxu0 %v338
        %1593 = vmatmul.f32.gmra.mxu0 %v1575
        %v1594 = vpop.f32.mrf.mxu0
        %v1595 = vadd.f32 0.0, %v1594
        %1596 = vdwg.mxu0
        %1598 = vrot.lane.b32.xlu0 %v1595, 36
        %v1599 = vpop.permute.xlu0 %1598
        %vm1601 = vcmask 326944
        %1602 = vst.msk [vmem:[%s335] sm:$0xff] %vm1601, %v1599
        %v1603 = vld [vmem:[%s2] sm:$0xf]
        %v1604 = vld [vmem:[%s2 + $0x4] sm:$0xf]
        %v1605 = vld [vmem:[%s2 + $0x8] sm:$0xf]
        %v1606 = vld [vmem:[%s2 + $0xc] sm:$0xf]
        %v1607 = vld [vmem:[%s417] sm:$0xf]
        %v1608 = vld [vmem:[%s417 + $0x4] sm:$0xf]
        %v1609 = vld [vmem:[%s417 + $0x8] sm:$0xf]
        %v1610 = vld [vmem:[%s417 + $0xc] sm:$0xf]
        %v1615 = vunpack.c.l.b16 %v1607
        %v1616 = vunpack.c.l.b16 %v1608
        %v1617 = vunpack.c.l.b16 %v1609
        %v1618 = vunpack.c.l.b16 %v1610
        %v1619 = vpack.c.b16 %v1616, %v1615
        %v1620 = vpack.c.b16 %v1618, %v1617
        %1623 = vmatpush.bf16.msra.mxu0 0
        %1624 = vmatpush.bf16.msra.mxu0 0
        %1625 = vmatpush.bf16.msra.mxu0 0
        %1626 = vmatpush.bf16.msra.mxu0 0
        %1627 = vmatpush.bf16.msra.mxu0 0
        %1628 = vmatpush.bf16.msra.mxu0 0
        %1629 = vmatpush.bf16.msra.mxu0 %v1620
        %1630 = vmatpush.bf16.msra.mxu0 %v1619
        %1631 = vmatmul.bf16.gmra.mxu0 %v1558
        %v1632 = vpop.f32.mrf.mxu0
        %v1633 = vadd.f32 0.0, %v1632
        %v1634 = vpop.f32.mrf.mxu0
        %1635 = vdwg.mxu0
        %v1637 = vshrl.u32 %v1543, 16
        %v1639 = vshll.u32 %v1543, 16
        %v1641 = vrot.slane %v1639, 1
        %v1642 = vor.u32 %v1637, %v1641
        %v1647 = vunpack.c.l.b16 %v1603
        %v1648 = vunpack.c.l.b16 %v1604
        %v1649 = vunpack.c.l.b16 %v1605
        %v1650 = vunpack.c.l.b16 %v1606
        %v1651 = vpack.c.b16 %v1648, %v1647
        %v1652 = vpack.c.b16 %v1650, %v1649
        %v1656 = vsel %vm369, %v1642, 0
        %1658 = vmatpush.bf16.msra.mxu0 0
        %1659 = vmatpush.bf16.msra.mxu0 0
        %1660 = vmatpush.bf16.msra.mxu0 0
        %1661 = vmatpush.bf16.msra.mxu0 0
        %1662 = vmatpush.bf16.msra.mxu0 0
        %1663 = vmatpush.bf16.msra.mxu0 0
        %1664 = vmatpush.bf16.msra.mxu0 %v1652
        %1665 = vmatpush.bf16.msra.mxu0 %v1651
        %1666 = vmatmul.bf16.gmra.mxu0 %v1656
        %v1667 = vpop.f32.mrf.mxu0
        %v1668 = vadd.f32 %v1633, %v1667
        %v1669 = vpop.f32.mrf.mxu0
        %1670 = vdwg.mxu0
        %v1671 = vld [vmem:[%s482] sm:$0xf]
        %v1672 = vld [vmem:[%s482 + $0x4] sm:$0xf]
        %v1673 = vld [vmem:[%s482 + $0x8] sm:$0xf]
        %v1674 = vld [vmem:[%s482 + $0xc] sm:$0xf]
        %v1675 = vrot.slane %v1637, 1
        %v1676 = vrot.slane %v1639, 2
        %v1677 = vor.u32 %v1675, %v1676
        %v1682 = vunpack.c.l.b16 %v1671
        %v1683 = vunpack.c.l.b16 %v1672
        %v1684 = vunpack.c.l.b16 %v1673
        %v1685 = vunpack.c.l.b16 %v1674
        %v1686 = vpack.c.b16 %v1683, %v1682
        %v1687 = vpack.c.b16 %v1685, %v1684
        %v1691 = vsel %vm369, %v1677, 0
        %1693 = vmatpush.bf16.msra.mxu0 0
        %1694 = vmatpush.bf16.msra.mxu0 0
        %1695 = vmatpush.bf16.msra.mxu0 0
        %1696 = vmatpush.bf16.msra.mxu0 0
        %1697 = vmatpush.bf16.msra.mxu0 0
        %1698 = vmatpush.bf16.msra.mxu0 0
        %1699 = vmatpush.bf16.msra.mxu0 %v1687
        %1700 = vmatpush.bf16.msra.mxu0 %v1686
        %1701 = vmatmul.bf16.gmra.mxu0 %v1691
        %v1702 = vpop.f32.mrf.mxu0
        %v1703 = vadd.f32 0.0, %v1702
        %v1704 = vpop.f32.mrf.mxu0
        %1705 = vdwg.mxu0
        %v1706 = vadd.f32 %v1668, %v1703
        %v1707 = vadd.f32 %v1706, %v519
        %v1708 = vtanh.pop %v1707
        %v1710 = vsel %vm387, %v1708, 0
        %1712 = vmatpush.msra.mxu0 0.0
        %1713 = vmatpush.msra.mxu0 0.0
        %1714 = vmatpush.msra.mxu0 0.0
        %1715 = vmatpush.msra.mxu0 0.0
        %1716 = vmatpush.msra.mxu0 0.0
        %1717 = vmatpush.msra.mxu0 0.0
        %1718 = vmatpush.msra.mxu0 0.0
        %1719 = vmatpush.msra.mxu0 0.0
        %1720 = vmatpush.msra.mxu0 0.0
        %1721 = vmatpush.msra.mxu0 0.0
        %1722 = vmatpush.msra.mxu0 0.0
        %1723 = vmatpush.msra.mxu0 0.0
        %1724 = vmatpush.msra.mxu0 0.0
        %1725 = vmatpush.msra.mxu0 0.0
        %1726 = vmatpush.msra.mxu0 0.0
        %1727 = vmatpush.msra.mxu0 %v338
        %1728 = vmatmul.f32.gmra.mxu0 %v1710
        %v1729 = vpop.f32.mrf.mxu0
        %v1730 = vadd.f32 0.0, %v1729
        %1731 = vdwg.mxu0
        %1733 = vrot.lane.b32.xlu0 %v1730, 40
        %v1734 = vpop.permute.xlu0 %1733
        %vm1736 = vcmask 359744
        %1737 = vst.msk [vmem:[%s335] sm:$0xff] %vm1736, %v1734
        %v1738 = vld [vmem:[%s3] sm:$0xf]
        %v1739 = vld [vmem:[%s3 + $0x4] sm:$0xf]
        %v1740 = vld [vmem:[%s3 + $0x8] sm:$0xf]
        %v1741 = vld [vmem:[%s3 + $0xc] sm:$0xf]
        %v1742 = vld [vmem:[%s555] sm:$0xf]
        %v1743 = vld [vmem:[%s555 + $0x4] sm:$0xf]
        %v1744 = vld [vmem:[%s555 + $0x8] sm:$0xf]
        %v1745 = vld [vmem:[%s555 + $0xc] sm:$0xf]
        %v1750 = vunpack.c.l.b16 %v1742
        %v1751 = vunpack.c.l.b16 %v1743
        %v1752 = vunpack.c.l.b16 %v1744
        %v1753 = vunpack.c.l.b16 %v1745
        %v1754 = vpack.c.b16 %v1751, %v1750
        %v1755 = vpack.c.b16 %v1753, %v1752
        %1758 = vmatpush.bf16.msra.mxu0 0
        %1759 = vmatpush.bf16.msra.mxu0 0
        %1760 = vmatpush.bf16.msra.mxu0 0
        %1761 = vmatpush.bf16.msra.mxu0 0
        %1762 = vmatpush.bf16.msra.mxu0 0
        %1763 = vmatpush.bf16.msra.mxu0 0
        %1764 = vmatpush.bf16.msra.mxu0 %v1755
        %1765 = vmatpush.bf16.msra.mxu0 %v1754
        %1766 = vmatmul.bf16.gmra.mxu0 %v1656
        %v1767 = vpop.f32.mrf.mxu0
        %v1768 = vadd.f32 0.0, %v1767
        %v1769 = vpop.f32.mrf.mxu0
        %1770 = vdwg.mxu0
        %v1775 = vunpack.c.l.b16 %v1738
        %v1776 = vunpack.c.l.b16 %v1739
        %v1777 = vunpack.c.l.b16 %v1740
        %v1778 = vunpack.c.l.b16 %v1741
        %v1779 = vpack.c.b16 %v1776, %v1775
        %v1780 = vpack.c.b16 %v1778, %v1777
        %v1784 = vsel %vm369, %v1533, 0
        %1786 = vmatpush.bf16.msra.mxu0 0
        %1787 = vmatpush.bf16.msra.mxu0 0
        %1788 = vmatpush.bf16.msra.mxu0 0
        %1789 = vmatpush.bf16.msra.mxu0 0
        %1790 = vmatpush.bf16.msra.mxu0 0
        %1791 = vmatpush.bf16.msra.mxu0 0
        %1792 = vmatpush.bf16.msra.mxu0 %v1780
        %1793 = vmatpush.bf16.msra.mxu0 %v1779
        %1794 = vmatmul.bf16.gmra.mxu0 %v1784
        %v1795 = vpop.f32.mrf.mxu0
        %v1796 = vadd.f32 %v1768, %v1795
        %v1797 = vpop.f32.mrf.mxu0
        %1798 = vdwg.mxu0
        %v1799 = vld [vmem:[%s613] sm:$0xf]
        %v1800 = vld [vmem:[%s613 + $0x4] sm:$0xf]
        %v1801 = vld [vmem:[%s613 + $0x8] sm:$0xf]
        %v1802 = vld [vmem:[%s613 + $0xc] sm:$0xf]
        %v1807 = vunpack.c.l.b16 %v1799
        %v1808 = vunpack.c.l.b16 %v1800
        %v1809 = vunpack.c.l.b16 %v1801
        %v1810 = vunpack.c.l.b16 %v1802
        %v1811 = vpack.c.b16 %v1808, %v1807
        %v1812 = vpack.c.b16 %v1810, %v1809
        %1815 = vmatpush.bf16.msra.mxu0 0
        %1816 = vmatpush.bf16.msra.mxu0 0
        %1817 = vmatpush.bf16.msra.mxu0 0
        %1818 = vmatpush.bf16.msra.mxu0 0
        %1819 = vmatpush.bf16.msra.mxu0 0
        %1820 = vmatpush.bf16.msra.mxu0 0
        %1821 = vmatpush.bf16.msra.mxu0 %v1812
        %1822 = vmatpush.bf16.msra.mxu0 %v1811
        %1823 = vmatmul.bf16.gmra.mxu0 %v1558
        %v1824 = vpop.f32.mrf.mxu0
        %v1825 = vadd.f32 0.0, %v1824
        %v1826 = vpop.f32.mrf.mxu0
        %1827 = vdwg.mxu0
        %v1828 = vadd.f32 %v1796, %v1825
        %v1829 = vld [vmem:[%s644] sm:$0xf]
        %v1830 = vld [vmem:[%s644 + $0x4] sm:$0xf]
        %v1831 = vld [vmem:[%s644 + $0x8] sm:$0xf]
        %v1832 = vld [vmem:[%s644 + $0xc] sm:$0xf]
        %v1837 = vunpack.c.l.b16 %v1829
        %v1838 = vunpack.c.l.b16 %v1830
        %v1839 = vunpack.c.l.b16 %v1831
        %v1840 = vunpack.c.l.b16 %v1832
        %v1841 = vpack.c.b16 %v1838, %v1837
        %v1842 = vpack.c.b16 %v1840, %v1839
        %1845 = vmatpush.bf16.msra.mxu0 0
        %1846 = vmatpush.bf16.msra.mxu0 0
        %1847 = vmatpush.bf16.msra.mxu0 0
        %1848 = vmatpush.bf16.msra.mxu0 0
        %1849 = vmatpush.bf16.msra.mxu0 0
        %1850 = vmatpush.bf16.msra.mxu0 0
        %1851 = vmatpush.bf16.msra.mxu0 %v1842
        %1852 = vmatpush.bf16.msra.mxu0 %v1841
        %1853 = vmatmul.bf16.gmra.mxu0 %v1691
        %v1854 = vpop.f32.mrf.mxu0
        %v1855 = vadd.f32 0.0, %v1854
        %v1856 = vpop.f32.mrf.mxu0
        %1857 = vdwg.mxu0
        %v1858 = vadd.f32 %v1828, %v1855
        %v1859 = vld [vmem:[%s675] sm:$0xf]
        %v1860 = vld [vmem:[%s675 + $0x4] sm:$0xf]
        %v1861 = vld [vmem:[%s675 + $0x8] sm:$0xf]
        %v1862 = vld [vmem:[%s675 + $0xc] sm:$0xf]
        %v1863 = vrot.slane %v1543, 2
        %v1868 = vunpack.c.l.b16 %v1859
        %v1869 = vunpack.c.l.b16 %v1860
        %v1870 = vunpack.c.l.b16 %v1861
        %v1871 = vunpack.c.l.b16 %v1862
        %v1872 = vpack.c.b16 %v1869, %v1868
        %v1873 = vpack.c.b16 %v1871, %v1870
        %v1877 = vsel %vm369, %v1863, 0
        %1879 = vmatpush.bf16.msra.mxu0 0
        %1880 = vmatpush.bf16.msra.mxu0 0
        %1881 = vmatpush.bf16.msra.mxu0 0
        %1882 = vmatpush.bf16.msra.mxu0 0
        %1883 = vmatpush.bf16.msra.mxu0 0
        %1884 = vmatpush.bf16.msra.mxu0 0
        %1885 = vmatpush.bf16.msra.mxu0 %v1873
        %1886 = vmatpush.bf16.msra.mxu0 %v1872
        %1887 = vmatmul.bf16.gmra.mxu0 %v1877
        %v1888 = vpop.f32.mrf.mxu0
        %v1889 = vadd.f32 0.0, %v1888
        %v1890 = vpop.f32.mrf.mxu0
        %1891 = vdwg.mxu0
        %v1892 = vadd.f32 %v1858, %v1889
        %v1893 = vadd.f32 %v1892, %v710
        %v1894 = vtanh.pop %v1893
        %v1896 = vsel %vm387, %v1894, 0
        %1898 = vmatpush.msra.mxu0 0.0
        %1899 = vmatpush.msra.mxu0 0.0
        %1900 = vmatpush.msra.mxu0 0.0
        %1901 = vmatpush.msra.mxu0 0.0
        %1902 = vmatpush.msra.mxu0 0.0
        %1903 = vmatpush.msra.mxu0 0.0
        %1904 = vmatpush.msra.mxu0 0.0
        %1905 = vmatpush.msra.mxu0 0.0
        %1906 = vmatpush.msra.mxu0 0.0
        %1907 = vmatpush.msra.mxu0 0.0
        %1908 = vmatpush.msra.mxu0 0.0
        %1909 = vmatpush.msra.mxu0 0.0
        %1910 = vmatpush.msra.mxu0 0.0
        %1911 = vmatpush.msra.mxu0 0.0
        %1912 = vmatpush.msra.mxu0 0.0
        %1913 = vmatpush.msra.mxu0 %v338
        %1914 = vmatmul.f32.gmra.mxu0 %v1896
        %v1915 = vpop.f32.mrf.mxu0
        %v1916 = vadd.f32 0.0, %v1915
        %1917 = vdwg.mxu0
        %1919 = vrot.lane.b32.xlu0 %v1916, 44
        %v1920 = vpop.permute.xlu0 %1919
        %vm1922 = vcmask 392544
        %1923 = vst.msk [vmem:[%s335] sm:$0xff] %vm1922, %v1920
        %s1924 = sand.u32 %s173, 1
        %s1925 = scalar_lea.sflag [#allocation4], %s1924
        %s1926 = sand.u32 %s173, 1
        %s1927 = smul.addr %s1926, 8
        %s1928 = scalar_lea.vmem [#allocation3], %s1927
        // Predicated region
        $region86: #{tpu_custom_call.1} parent=80 // pred_check
          %p1929 = pneg %p183
        $region87: #{tpu_custom_call.1} parent=80 // pred_check_branch
          %1931 = sbr.rel (%p1929) target = $region89
        $region88: #{tpu_custom_call.1} parent=80 // pred_region
          %1933 = vsyncadd %s1925, 0
          %s1934 = sadd.s32 %s25, %s24
          %s1935 = smul.addr %s1934, 8
          %s1936 = scalar_lea.hbm %s6, %s1935
          %s1938 = sshll.u32 %s1928, 4
          %s1939 = int_to_ptr.vmem [resolvable:$true] %s1938
          %s1940 = sshll.u32 %s1936, 4
          %s1941 = int_to_ptr.hbm [resolvable:$true] %s1940
          %1943 = dma.vmem_to_hbm [thread:$0]  %s1939, 128, %s1941, %s1925
        $region89: #{tpu_custom_call.1} parent=80 // pred_fallthru
          _
      $region81: #{tpu_custom_call.1} parent=5 // pred_fallthru
        _
      %p1944 = scmp.le.s32.totalorder 2, %s15
      // Predicated region
      $region90: #{tpu_custom_call.1} parent=5 // pred_check
        %p1945 = pneg %p1944
      $region91: #{tpu_custom_call.1} parent=5 // pred_check_branch
        %1947 = sbr.rel (%p1945) target = $region93
      $region92: #{tpu_custom_call.1} parent=5 // pred_region
        %s1948 = ssub.s32 %s15, 2
        // Predicated region
        $region94: #{tpu_custom_call.1} parent=92 // pred_check
          %p1949 = pneg %p189
        $region95: #{tpu_custom_call.1} parent=92 // pred_check_branch
          %1951 = sbr.rel (%p1949) target = $region97
        $region96: #{tpu_custom_call.1} parent=92 // pred_region
          %s1952 = sand.u32 %s174, 1
          %s1953 = scalar_lea.sflag [#allocation4], %s1952
          %s1954 = sand.u32 %s174, 1
          %s1955 = smul.addr %s1954, 8
          %s1956 = scalar_lea.vmem [#allocation3], %s1955
          %1958 = dma.done %s1953, 128
        $region97: #{tpu_custom_call.1} parent=92 // pred_fallthru
          _
      $region93: #{tpu_custom_call.1} parent=5 // pred_fallthru
        _
    $region6: #{tpu_custom_call.1} parent=1 // loop_footer
      %s19 = sadd.s32 1, %s15
    $region7: #{tpu_custom_call.1} parent=1 // loop_footer_branch
      %14 = sbr.rel target = $region3
    $region8: #{tpu_custom_call.1} parent=1 // loop_exit
      _
    %1959 = vsyncpa [#allocation4], 1
    %s1960 = scalar_lea.sflag [#allocation4], 1
    %1961 = vsyncpa %s1960, 1

</llo_original>
